<compile_context>
chip_gen: v7x
topology: tpu7x:2x2x1
jax: 0.10.0
libtpu: 0.0.40
codegen_flags: <defaults>
</compile_context>

<pallas_src>
import functools

import numpy as np
import jax
import jax.numpy as jnp
from jax import lax
from jax.experimental import pallas as pl
from jax.experimental.pallas import tpu as pltpu


# ---------------------------------------------------------------------------
# kernel
# ---------------------------------------------------------------------------
def _mish(z):
    # mish(z) = z * tanh(softplus(z)); with t = e^z:
    #   tanh(log1p(t)) = t*(t+2) / (t*(t+2) + 2)
    # Clamp at 20 before exp: there tanh(softplus) == 1 to f32 precision.
    t = jnp.exp(jnp.minimum(z, 20.0))
    g = t * (t + 2.0)
    return z * (g * pl.reciprocal(g + 2.0, approx=True))


def _csp_kernel(p_ref, w1_ref, s1_ref, b1_ref,
                ws0_ref, ss0_ref, bs0_ref,
                ws1_ref, ss1_ref, bs1_ref,
                wa_ref, sa_ref, ba_ref,
                wb_ref, sb_ref, bb_ref,
                wl2_ref, sl2_ref, bl2_ref,
                em_ref, o_ref, *, nblocks, w2):
    f32 = jnp.float32
    bf16 = jnp.bfloat16

    mask_l = em_ref[0:1, :]   # valid lanes for an ox = -1 tap (x2 > 0)
    mask_r = em_ref[1:2, :]   # valid lanes for an ox = +1 tap (x2 < W2-1)

    def bn(z, s, b):
        return z * s + b

    def conv1x1(act_f32, w_bf16):
        # (Cout, Cin) @ (Cin, HW) on the MXU, bf16 in / f32 accumulate.
        return jnp.dot(w_bf16, act_f32.astype(bf16), preferred_element_type=f32)

    def shift_cols(u, d):
        # v[:, p] = u[:, p + d], zero-filled outside [0, HW).
        # (pltpu.roll + mask would also work; slice+concat keeps the zero fill
        #  explicit and needs no wrap mask along the flattened y direction.)
        if d == 0:
            return u
        c = u.shape[0]
        if d > 0:
            return jnp.concatenate([u[:, d:], jnp.zeros((c, d), u.dtype)], axis=1)
        return jnp.concatenate([jnp.zeros((c, -d), u.dtype), u[:, :d]], axis=1)

    def conv3x3_same(u_f32, w_mat_bf16):
        # im2col on the flattened spatial axis: 9 in-register shifts, one matmul.
        taps = []
        for ky in range(3):
            for kx in range(3):
                tap = shift_cols(u_f32, (ky - 1) * w2 + (kx - 1))
                if kx == 0:
                    tap = tap * mask_l
                elif kx == 2:
                    tap = tap * mask_r
                taps.append(tap)
        patches = jnp.concatenate(taps, axis=0).astype(bf16)     # (9*Cin, HW)
        return jnp.dot(w_mat_bf16, patches, preferred_element_type=f32)

    # ---- layer1: 3x3 stride-2 conv (patches prebuilt) + BN + mish ----
    x1 = _mish(bn(jnp.dot(w1_ref[...], p_ref[0], preferred_element_type=f32),
                  s1_ref[...], b1_ref[...]))                      # (2*Cin, HW)

    # ---- split0 / split1: 1x1 conv + BN + mish ----
    s0 = _mish(bn(conv1x1(x1, ws0_ref[...]), ss0_ref[...], bs0_ref[...]))  # (C, HW)
    t = _mish(bn(conv1x1(x1, ws1_ref[...]), ss1_ref[...], bs1_ref[...]))   # (C, HW)

    # ---- DarkResidualBlocks (statically unrolled) ----
    for i in range(nblocks):
        u = _mish(bn(conv1x1(t, wa_ref[i]), sa_ref[i], ba_ref[i]))          # (C/2, HW)
        v = _mish(bn(conv3x3_same(u, wb_ref[i]), sb_ref[i], bb_ref[i]))     # (C,   HW)
        t = t + v

    # ---- layer2: 1x1 conv + BN + mish ----
    y = _mish(bn(conv1x1(t, wl2_ref[...]), sl2_ref[...], bl2_ref[...]))     # (C, HW)

    # route = cat([split0, layer2(blocks)], channel) -> one lane-dense store
    o_ref[0] = jnp.concatenate([s0, y], axis=0).astype(o_ref.dtype)


# ---------------------------------------------------------------------------
# wrapper
# ---------------------------------------------------------------------------
def csp_block(x, params, *, nblocks):
    """x: (N, Cin, H, W) float32 (PyTorch NCHW). Returns (N, 2*Cin, H//2, W//2)."""
    N, Cin, H, W = x.shape
    C2 = 2 * Cin               # out_channels
    H2, W2 = H // 2, W // 2
    HW2 = H2 * W2

    # layer1 im2col (stride-2 patch extraction is pure strided data movement;
    # the matmul + BN + mish happens inside the kernel).
    xp = jnp.pad(x, ((0, 0), (0, 0), (1, 1), (1, 1)))
    taps = [xp[:, :, ky:ky + H:2, kx:kx + W:2]
            for ky in range(3) for kx in range(3)]                # each (N,Cin,H2,W2)
    patches = jnp.stack(taps, axis=1).reshape(N, 9 * Cin, HW2).astype(jnp.bfloat16)

    # edge-validity masks for the in-kernel 3x3 on the flattened spatial axis
    col = np.arange(HW2) % W2
    em = jnp.asarray(np.stack([(col > 0), (col < W2 - 1)]).astype(np.float32))

    (w1m, s1, b1, ws0, ss0, bs0, ws1, ss1, bs1,
     wa, sa, ba, wb, sb, bb, wl2, sl2, bl2) = params

    inputs = (patches, w1m, s1, b1, ws0, ss0, bs0, ws1, ss1, bs1,
              wa, sa, ba, wb, sb, bb, wl2, sl2, bl2, em)

    def batch_spec(a):
        return pl.BlockSpec((1,) + a.shape[1:], lambda n: (n,) + (0,) * (a.ndim - 1))

    def full_spec(a):
        return pl.BlockSpec(a.shape, lambda n: (0,) * a.ndim)

    in_specs = [batch_spec(patches)] + [full_spec(a) for a in inputs[1:]]

    out = pl.pallas_call(
        functools.partial(_csp_kernel, nblocks=nblocks, w2=W2),
        out_shape=jax.ShapeDtypeStruct((N, C2, HW2), x.dtype),
        grid_spec=pltpu.PrefetchScalarGridSpec(
            num_scalar_prefetch=0,
            grid=(N,),
            in_specs=in_specs,
            out_specs=pl.BlockSpec((1, C2, HW2), lambda n: (n, 0, 0)),
        ),
        compiler_params=pltpu.CompilerParams(
            dimension_semantics=("parallel",),
            vmem_limit_bytes=32 * 1024 * 1024),
    )(*inputs)

    return out.reshape(N, C2, H2, W2)


# ---------------------------------------------------------------------------
# parameter construction (deterministic, inference-mode folded BN)
# ---------------------------------------------------------------------------
def _fold_bn(gamma, beta, mean, var, eps=1e-5):
    s = gamma / jnp.sqrt(var + eps)
    return s, beta - mean * s


def make_params(key, cin, nblocks):
    c2, c, cr = 2 * cin, cin, cin // 2
    n_conv = 4 + 2 * nblocks
    keys = jax.random.split(key, 2 * n_conv)
    it = iter(range(2 * n_conv))

    def conv_bn(cout, cin_, k):
        w = jax.random.normal(keys[next(it)], (cout, cin_, k, k), jnp.float32)
        w = w * (1.0 / np.sqrt(cin_ * k * k))
        kb = jax.random.split(keys[next(it)], 4)
        g = jax.random.uniform(kb[0], (cout,), jnp.float32, 0.5, 1.5)
        be = jax.random.normal(kb[1], (cout,), jnp.float32) * 0.1
        m = jax.random.normal(kb[2], (cout,), jnp.float32) * 0.1
        v = jax.random.uniform(kb[3], (cout,), jnp.float32, 0.5, 1.5)
        s, b = _fold_bn(g, be, m, v)
        return w, s, b

    return {
        'layer1': conv_bn(c2, cin, 3),
        'split0': conv_bn(c, c2, 1),
        'split1': conv_bn(c, c2, 1),
        'block_a': [conv_bn(cr, c, 1) for _ in range(nblocks)],
        'block_b': [conv_bn(c, cr, 3) for _ in range(nblocks)],
        'layer2': conv_bn(c, c, 1),
    }


def kernel_params_from_raw(raw):
    bf16 = jnp.bfloat16

    def mat3(w):   # OIHW (Cout, Cin, 3, 3) -> (Cout, 9*Cin), tap-major columns
        return w.transpose(0, 2, 3, 1).reshape(w.shape[0], -1).astype(bf16)

    def mat1(w):   # OIHW (Cout, Cin, 1, 1) -> (Cout, Cin)
        return w[:, :, 0, 0].astype(bf16)

    def colv(v):   # (C,) -> (C, 1) f32 (broadcast along lanes in-kernel)
        return v.reshape(-1, 1).astype(jnp.float32)

    w1, s1, b1 = raw['layer1']
    ws0, ss0, bs0 = raw['split0']
    ws1, ss1, bs1 = raw['split1']
    wl2, sl2, bl2 = raw['layer2']

    wa = jnp.stack([mat1(w) for w, _, _ in raw['block_a']])
    sa = jnp.stack([colv(s) for _, s, _ in raw['block_a']])
    ba = jnp.stack([colv(b) for _, _, b in raw['block_a']])
    wb = jnp.stack([mat3(w) for w, _, _ in raw['block_b']])
    sb = jnp.stack([colv(s) for _, s, _ in raw['block_b']])
    bb = jnp.stack([colv(b) for _, _, b in raw['block_b']])

    return (mat3(w1), colv(s1), colv(b1),
            mat1(ws0), colv(ss0), colv(bs0),
            mat1(ws1), colv(ss1), colv(bs1),
            wa, sa, ba, wb, sb, bb,
            mat1(wl2), colv(sl2), colv(bl2))


# ---------------------------------------------------------------------------
# pure-JAX reference (lax.conv, NCHW), same bf16-in / f32-accumulate precision
# ---------------------------------------------------------------------------
def _conv_ref(x, w_oihw, stride, pad):
    return lax.conv_general_dilated(
        x.astype(jnp.bfloat16), w_oihw.astype(jnp.bfloat16),
        window_strides=(stride, stride), padding=[(pad, pad), (pad, pad)],
        dimension_numbers=('NCHW', 'OIHW', 'NCHW'),
        preferred_element_type=jnp.float32)


def _cbm_ref(x, w, s, b, stride, pad):
    y = _conv_ref(x, w, stride, pad)
    y = y * s.reshape(1, -1, 1, 1) + b.reshape(1, -1, 1, 1)
    return y * jnp.tanh(jax.nn.softplus(y))


def csp_block_ref(x, raw, nblocks):
    x1 = _cbm_ref(x, *raw['layer1'], 2, 1)
    s0 = _cbm_ref(x1, *raw['split0'], 1, 0)
    t = _cbm_ref(x1, *raw['split1'], 1, 0)
    for i in range(nblocks):
        u = _cbm_ref(t, *raw['block_a'][i], 1, 0)
        v = _cbm_ref(u, *raw['block_b'][i], 1, 1)
        t = t + v
    y = _cbm_ref(t, *raw['layer2'], 1, 0)
    return jnp.concatenate([s0, y], axis=1)


# ---------------------------------------------------------------------------
if __name__ == "__main__":
    N, CIN, H, W = 2, 4, 32, 32      # H=W=32 -> flattened spatial 16*16=256 lanes
    NBLOCKS = 2

    key = jax.random.PRNGKey(0)
    kx, kp = jax.random.split(key)
    x = jax.random.normal(kx, (N, CIN, H, W), jnp.float32)

    raw = make_params(kp, CIN, NBLOCKS)
    params = kernel_params_from_raw(raw)

    out = csp_block(x, params, nblocks=NBLOCKS)
    out = jax.block_until_ready(out)

    ref = csp_block_ref(x, raw, NBLOCKS)
    assert out.shape == (N, 2 * CIN, H // 2, W // 2)
    max_err = float(jnp.max(jnp.abs(out - ref)))
    assert jnp.allclose(out, ref, atol=2e-2, rtol=2e-2), max_err

    print("KERNEL_OK")
</pallas_src>

<mosaic_0001>
module attributes {stable_mosaic.version = 11 : i64} {
  func.func @_csp_kernel(%arg0: i32, %arg1: memref<1x36x256xbf16, #tpu.memory_space<vmem>>, %arg2: memref<8x36xbf16, #tpu.memory_space<vmem>>, %arg3: memref<8x1xf32, #tpu.memory_space<vmem>>, %arg4: memref<8x1xf32, #tpu.memory_space<vmem>>, %arg5: memref<4x8xbf16, #tpu.memory_space<vmem>>, %arg6: memref<4x1xf32, #tpu.memory_space<vmem>>, %arg7: memref<4x1xf32, #tpu.memory_space<vmem>>, %arg8: memref<4x8xbf16, #tpu.memory_space<vmem>>, %arg9: memref<4x1xf32, #tpu.memory_space<vmem>>, %arg10: memref<4x1xf32, #tpu.memory_space<vmem>>, %arg11: memref<2x2x4xbf16, #tpu.memory_space<vmem>>, %arg12: memref<2x2x1xf32, #tpu.memory_space<vmem>>, %arg13: memref<2x2x1xf32, #tpu.memory_space<vmem>>, %arg14: memref<2x4x18xbf16, #tpu.memory_space<vmem>>, %arg15: memref<2x4x1xf32, #tpu.memory_space<vmem>>, %arg16: memref<2x4x1xf32, #tpu.memory_space<vmem>>, %arg17: memref<4x4xbf16, #tpu.memory_space<vmem>>, %arg18: memref<4x1xf32, #tpu.memory_space<vmem>>, %arg19: memref<4x1xf32, #tpu.memory_space<vmem>>, %arg20: memref<2x256xf32, #tpu.memory_space<vmem>>, %arg21: memref<1x8x256xf32, #tpu.memory_space<vmem>>) attributes {dimension_semantics = [#tpu.dimension_semantics<parallel>], iteration_bounds = array<i64: 2>, scalar_prefetch = 0 : i64, scratch_operands = 0 : i64, tpu.core_type = #tpu.core_type<tc>, window_params = [{transform_indices = @transform_0, window_bounds = array<i64: 1, 36, 256>}, {pipeline_mode = #tpu.pipeline_mode<synchronous>, transform_indices = @transform_1, window_bounds = array<i64: 8, 36>}, {pipeline_mode = #tpu.pipeline_mode<synchronous>, transform_indices = @transform_2, window_bounds = array<i64: 8, 1>}, {pipeline_mode = #tpu.pipeline_mode<synchronous>, transform_indices = @transform_3, window_bounds = array<i64: 8, 1>}, {pipeline_mode = #tpu.pipeline_mode<synchronous>, transform_indices = @transform_4, window_bounds = array<i64: 4, 8>}, {pipeline_mode = #tpu.pipeline_mode<synchronous>, transform_indices = @transform_5, window_bounds = array<i64: 4, 1>}, {pipeline_mode = #tpu.pipeline_mode<synchronous>, transform_indices = @transform_6, window_bounds = array<i64: 4, 1>}, {pipeline_mode = #tpu.pipeline_mode<synchronous>, transform_indices = @transform_7, window_bounds = array<i64: 4, 8>}, {pipeline_mode = #tpu.pipeline_mode<synchronous>, transform_indices = @transform_8, window_bounds = array<i64: 4, 1>}, {pipeline_mode = #tpu.pipeline_mode<synchronous>, transform_indices = @transform_9, window_bounds = array<i64: 4, 1>}, {pipeline_mode = #tpu.pipeline_mode<synchronous>, transform_indices = @transform_10, window_bounds = array<i64: 2, 2, 4>}, {pipeline_mode = #tpu.pipeline_mode<synchronous>, transform_indices = @transform_11, window_bounds = array<i64: 2, 2, 1>}, {pipeline_mode = #tpu.pipeline_mode<synchronous>, transform_indices = @transform_12, window_bounds = array<i64: 2, 2, 1>}, {pipeline_mode = #tpu.pipeline_mode<synchronous>, transform_indices = @transform_13, window_bounds = array<i64: 2, 4, 18>}, {pipeline_mode = #tpu.pipeline_mode<synchronous>, transform_indices = @transform_14, window_bounds = array<i64: 2, 4, 1>}, {pipeline_mode = #tpu.pipeline_mode<synchronous>, transform_indices = @transform_15, window_bounds = array<i64: 2, 4, 1>}, {pipeline_mode = #tpu.pipeline_mode<synchronous>, transform_indices = @transform_16, window_bounds = array<i64: 4, 4>}, {pipeline_mode = #tpu.pipeline_mode<synchronous>, transform_indices = @transform_17, window_bounds = array<i64: 4, 1>}, {pipeline_mode = #tpu.pipeline_mode<synchronous>, transform_indices = @transform_18, window_bounds = array<i64: 4, 1>}, {pipeline_mode = #tpu.pipeline_mode<synchronous>, transform_indices = @transform_19, window_bounds = array<i64: 2, 256>}, {transform_indices = @transform_20, window_bounds = array<i64: 1, 8, 256>}]} {
    %c0 = arith.constant 0 : index
    %c0_0 = arith.constant 0 : index
    %0 = vector.load %arg20[%c0, %c0_0] : memref<2x256xf32, #tpu.memory_space<vmem>>, vector<1x256xf32>
    %c1 = arith.constant 1 : index
    %c0_1 = arith.constant 0 : index
    %1 = vector.load %arg20[%c1, %c0_1] : memref<2x256xf32, #tpu.memory_space<vmem>>, vector<1x256xf32>
    %c0_2 = arith.constant 0 : index
    %c0_3 = arith.constant 0 : index
    %2 = vector.load %arg2[%c0_2, %c0_3] : memref<8x36xbf16, #tpu.memory_space<vmem>>, vector<8x36xbf16>
    %c0_4 = arith.constant 0 : index
    %c0_5 = arith.constant 0 : index
    %c0_6 = arith.constant 0 : index
    %3 = vector.load %arg1[%c0_4, %c0_5, %c0_6] : memref<1x36x256xbf16, #tpu.memory_space<vmem>>, vector<1x36x256xbf16>
    %4 = vector.shape_cast %3 : vector<1x36x256xbf16> to vector<36x256xbf16>
    %cst = arith.constant dense<0.000000e+00> : vector<8x256xf32>
    %5 = tpu.matmul %2, %4, %cst {dimension_numbers = #tpu.dot_dimension_numbers<[1], [0], [0], [1], [0, 0, 1, 1], [], []>} : vector<8x36xbf16>, vector<36x256xbf16>, vector<8x256xf32> -> vector<8x256xf32>
    %c0_7 = arith.constant 0 : index
    %c0_8 = arith.constant 0 : index
    %6 = vector.load %arg3[%c0_7, %c0_8] : memref<8x1xf32, #tpu.memory_space<vmem>>, vector<8x1xf32>
    %c0_9 = arith.constant 0 : index
    %c0_10 = arith.constant 0 : index
    %7 = vector.load %arg4[%c0_9, %c0_10] : memref<8x1xf32, #tpu.memory_space<vmem>>, vector<8x1xf32>
    %8 = vector.broadcast %6 : vector<8x1xf32> to vector<8x256xf32>
    %9 = arith.mulf %5, %8 : vector<8x256xf32>
    %10 = vector.broadcast %7 : vector<8x1xf32> to vector<8x256xf32>
    %11 = arith.addf %9, %10 : vector<8x256xf32>
    %cst_11 = arith.constant 2.000000e+01 : f32
    %12 = vector.broadcast %cst_11 : f32 to vector<8x256xf32>
    %13 = arith.minimumf %11, %12 : vector<8x256xf32>
    %14 = math.exp %13 : vector<8x256xf32>
    %cst_12 = arith.constant 2.000000e+00 : f32
    %15 = vector.broadcast %cst_12 : f32 to vector<8x256xf32>
    %16 = arith.addf %14, %15 : vector<8x256xf32>
    %17 = arith.mulf %14, %16 : vector<8x256xf32>
    %cst_13 = arith.constant 2.000000e+00 : f32
    %18 = vector.broadcast %cst_13 : f32 to vector<8x256xf32>
    %19 = arith.addf %17, %18 : vector<8x256xf32>
    %20 = tpu.reciprocal %19 {approx = true} : vector<8x256xf32> -> vector<8x256xf32>
    %21 = arith.mulf %17, %20 : vector<8x256xf32>
    %22 = arith.mulf %11, %21 : vector<8x256xf32>
    %c0_14 = arith.constant 0 : index
    %c0_15 = arith.constant 0 : index
    %23 = vector.load %arg5[%c0_14, %c0_15] : memref<4x8xbf16, #tpu.memory_space<vmem>>, vector<4x8xbf16>
    %24 = arith.truncf %22 : vector<8x256xf32> to vector<8x256xbf16>
    %cst_16 = arith.constant dense<0.000000e+00> : vector<4x256xf32>
    %25 = tpu.matmul %23, %24, %cst_16 {dimension_numbers = #tpu.dot_dimension_numbers<[1], [0], [0], [1], [0, 0, 1, 1], [], []>} : vector<4x8xbf16>, vector<8x256xbf16>, vector<4x256xf32> -> vector<4x256xf32>
    %c0_17 = arith.constant 0 : index
    %c0_18 = arith.constant 0 : index
    %26 = vector.load %arg6[%c0_17, %c0_18] : memref<4x1xf32, #tpu.memory_space<vmem>>, vector<4x1xf32>
    %c0_19 = arith.constant 0 : index
    %c0_20 = arith.constant 0 : index
    %27 = vector.load %arg7[%c0_19, %c0_20] : memref<4x1xf32, #tpu.memory_space<vmem>>, vector<4x1xf32>
    %28 = vector.broadcast %26 : vector<4x1xf32> to vector<4x256xf32>
    %29 = arith.mulf %25, %28 : vector<4x256xf32>
    %30 = vector.broadcast %27 : vector<4x1xf32> to vector<4x256xf32>
    %31 = arith.addf %29, %30 : vector<4x256xf32>
    %cst_21 = arith.constant 2.000000e+01 : f32
    %32 = vector.broadcast %cst_21 : f32 to vector<4x256xf32>
    %33 = arith.minimumf %31, %32 : vector<4x256xf32>
    %34 = math.exp %33 : vector<4x256xf32>
    %cst_22 = arith.constant 2.000000e+00 : f32
    %35 = vector.broadcast %cst_22 : f32 to vector<4x256xf32>
    %36 = arith.addf %34, %35 : vector<4x256xf32>
    %37 = arith.mulf %34, %36 : vector<4x256xf32>
    %cst_23 = arith.constant 2.000000e+00 : f32
    %38 = vector.broadcast %cst_23 : f32 to vector<4x256xf32>
    %39 = arith.addf %37, %38 : vector<4x256xf32>
    %40 = tpu.reciprocal %39 {approx = true} : vector<4x256xf32> -> vector<4x256xf32>
    %41 = arith.mulf %37, %40 : vector<4x256xf32>
    %42 = arith.mulf %31, %41 : vector<4x256xf32>
    %c0_24 = arith.constant 0 : index
    %c0_25 = arith.constant 0 : index
    %43 = vector.load %arg8[%c0_24, %c0_25] : memref<4x8xbf16, #tpu.memory_space<vmem>>, vector<4x8xbf16>
    %44 = arith.truncf %22 : vector<8x256xf32> to vector<8x256xbf16>
    %cst_26 = arith.constant dense<0.000000e+00> : vector<4x256xf32>
    %45 = tpu.matmul %43, %44, %cst_26 {dimension_numbers = #tpu.dot_dimension_numbers<[1], [0], [0], [1], [0, 0, 1, 1], [], []>} : vector<4x8xbf16>, vector<8x256xbf16>, vector<4x256xf32> -> vector<4x256xf32>
    %c0_27 = arith.constant 0 : index
    %c0_28 = arith.constant 0 : index
    %46 = vector.load %arg9[%c0_27, %c0_28] : memref<4x1xf32, #tpu.memory_space<vmem>>, vector<4x1xf32>
    %c0_29 = arith.constant 0 : index
    %c0_30 = arith.constant 0 : index
    %47 = vector.load %arg10[%c0_29, %c0_30] : memref<4x1xf32, #tpu.memory_space<vmem>>, vector<4x1xf32>
    %48 = vector.broadcast %46 : vector<4x1xf32> to vector<4x256xf32>
    %49 = arith.mulf %45, %48 : vector<4x256xf32>
    %50 = vector.broadcast %47 : vector<4x1xf32> to vector<4x256xf32>
    %51 = arith.addf %49, %50 : vector<4x256xf32>
    %cst_31 = arith.constant 2.000000e+01 : f32
    %52 = vector.broadcast %cst_31 : f32 to vector<4x256xf32>
    %53 = arith.minimumf %51, %52 : vector<4x256xf32>
    %54 = math.exp %53 : vector<4x256xf32>
    %cst_32 = arith.constant 2.000000e+00 : f32
    %55 = vector.broadcast %cst_32 : f32 to vector<4x256xf32>
    %56 = arith.addf %54, %55 : vector<4x256xf32>
    %57 = arith.mulf %54, %56 : vector<4x256xf32>
    %cst_33 = arith.constant 2.000000e+00 : f32
    %58 = vector.broadcast %cst_33 : f32 to vector<4x256xf32>
    %59 = arith.addf %57, %58 : vector<4x256xf32>
    %60 = tpu.reciprocal %59 {approx = true} : vector<4x256xf32> -> vector<4x256xf32>
    %61 = arith.mulf %57, %60 : vector<4x256xf32>
    %62 = arith.mulf %51, %61 : vector<4x256xf32>
    %c0_34 = arith.constant 0 : index
    %c0_35 = arith.constant 0 : index
    %c0_36 = arith.constant 0 : index
    %63 = vector.load %arg11[%c0_34, %c0_35, %c0_36] : memref<2x2x4xbf16, #tpu.memory_space<vmem>>, vector<1x2x4xbf16>
    %64 = vector.shape_cast %63 : vector<1x2x4xbf16> to vector<2x4xbf16>
    %65 = arith.truncf %62 : vector<4x256xf32> to vector<4x256xbf16>
    %cst_37 = arith.constant dense<0.000000e+00> : vector<2x256xf32>
    %66 = tpu.matmul %64, %65, %cst_37 {dimension_numbers = #tpu.dot_dimension_numbers<[1], [0], [0], [1], [0, 0, 1, 1], [], []>} : vector<2x4xbf16>, vector<4x256xbf16>, vector<2x256xf32> -> vector<2x256xf32>
    %c0_38 = arith.constant 0 : index
    %c0_39 = arith.constant 0 : index
    %c0_40 = arith.constant 0 : index
    %67 = vector.load %arg12[%c0_38, %c0_39, %c0_40] : memref<2x2x1xf32, #tpu.memory_space<vmem>>, vector<1x2x1xf32>
    %68 = vector.shape_cast %67 : vector<1x2x1xf32> to vector<2x1xf32>
    %c0_41 = arith.constant 0 : index
    %c0_42 = arith.constant 0 : index
    %c0_43 = arith.constant 0 : index
    %69 = vector.load %arg13[%c0_41, %c0_42, %c0_43] : memref<2x2x1xf32, #tpu.memory_space<vmem>>, vector<1x2x1xf32>
    %70 = vector.shape_cast %69 : vector<1x2x1xf32> to vector<2x1xf32>
    %71 = vector.broadcast %68 : vector<2x1xf32> to vector<2x256xf32>
    %72 = arith.mulf %66, %71 : vector<2x256xf32>
    %73 = vector.broadcast %70 : vector<2x1xf32> to vector<2x256xf32>
    %74 = arith.addf %72, %73 : vector<2x256xf32>
    %cst_44 = arith.constant 2.000000e+01 : f32
    %75 = vector.broadcast %cst_44 : f32 to vector<2x256xf32>
    %76 = arith.minimumf %74, %75 : vector<2x256xf32>
    %77 = math.exp %76 : vector<2x256xf32>
    %cst_45 = arith.constant 2.000000e+00 : f32
    %78 = vector.broadcast %cst_45 : f32 to vector<2x256xf32>
    %79 = arith.addf %77, %78 : vector<2x256xf32>
    %80 = arith.mulf %77, %79 : vector<2x256xf32>
    %cst_46 = arith.constant 2.000000e+00 : f32
    %81 = vector.broadcast %cst_46 : f32 to vector<2x256xf32>
    %82 = arith.addf %80, %81 : vector<2x256xf32>
    %83 = tpu.reciprocal %82 {approx = true} : vector<2x256xf32> -> vector<2x256xf32>
    %84 = arith.mulf %80, %83 : vector<2x256xf32>
    %85 = arith.mulf %74, %84 : vector<2x256xf32>
    %c0_47 = arith.constant 0 : index
    %c0_48 = arith.constant 0 : index
    %c0_49 = arith.constant 0 : index
    %86 = vector.load %arg14[%c0_47, %c0_48, %c0_49] : memref<2x4x18xbf16, #tpu.memory_space<vmem>>, vector<1x4x18xbf16>
    %87 = vector.shape_cast %86 : vector<1x4x18xbf16> to vector<4x18xbf16>
    %cst_50 = arith.constant 0.000000e+00 : f32
    %88 = vector.broadcast %cst_50 : f32 to vector<2x17xf32>
    %89 = vector.extract_strided_slice %85 {offsets = [0, 0], sizes = [2, 239], strides = [1, 1]} : vector<2x256xf32> to vector<2x239xf32>
    %90 = tpu.concatenate %88, %89 in 1 : vector<2x17xf32>, vector<2x239xf32> -> vector<2x256xf32>
    %91 = vector.broadcast %0 : vector<1x256xf32> to vector<2x256xf32>
    %92 = arith.mulf %90, %91 : vector<2x256xf32>
    %cst_51 = arith.constant 0.000000e+00 : f32
    %93 = vector.broadcast %cst_51 : f32 to vector<2x16xf32>
    %94 = vector.extract_strided_slice %85 {offsets = [0, 0], sizes = [2, 240], strides = [1, 1]} : vector<2x256xf32> to vector<2x240xf32>
    %95 = tpu.concatenate %93, %94 in 1 : vector<2x16xf32>, vector<2x240xf32> -> vector<2x256xf32>
    %cst_52 = arith.constant 0.000000e+00 : f32
    %96 = vector.broadcast %cst_52 : f32 to vector<2x15xf32>
    %97 = vector.extract_strided_slice %85 {offsets = [0, 0], sizes = [2, 241], strides = [1, 1]} : vector<2x256xf32> to vector<2x241xf32>
    %98 = tpu.concatenate %96, %97 in 1 : vector<2x15xf32>, vector<2x241xf32> -> vector<2x256xf32>
    %99 = vector.broadcast %1 : vector<1x256xf32> to vector<2x256xf32>
    %100 = arith.mulf %98, %99 : vector<2x256xf32>
    %cst_53 = arith.constant 0.000000e+00 : f32
    %101 = vector.broadcast %cst_53 : f32 to vector<2x1xf32>
    %102 = vector.extract_strided_slice %85 {offsets = [0, 0], sizes = [2, 255], strides = [1, 1]} : vector<2x256xf32> to vector<2x255xf32>
    %103 = tpu.concatenate %101, %102 in 1 : vector<2x1xf32>, vector<2x255xf32> -> vector<2x256xf32>
    %104 = vector.broadcast %0 : vector<1x256xf32> to vector<2x256xf32>
    %105 = arith.mulf %103, %104 : vector<2x256xf32>
    %106 = vector.extract_strided_slice %85 {offsets = [0, 1], sizes = [2, 255], strides = [1, 1]} : vector<2x256xf32> to vector<2x255xf32>
    %cst_54 = arith.constant 0.000000e+00 : f32
    %107 = vector.broadcast %cst_54 : f32 to vector<2x1xf32>
    %108 = tpu.concatenate %106, %107 in 1 : vector<2x255xf32>, vector<2x1xf32> -> vector<2x256xf32>
    %109 = vector.broadcast %1 : vector<1x256xf32> to vector<2x256xf32>
    %110 = arith.mulf %108, %109 : vector<2x256xf32>
    %111 = vector.extract_strided_slice %85 {offsets = [0, 15], sizes = [2, 241], strides = [1, 1]} : vector<2x256xf32> to vector<2x241xf32>
    %cst_55 = arith.constant 0.000000e+00 : f32
    %112 = vector.broadcast %cst_55 : f32 to vector<2x15xf32>
    %113 = tpu.concatenate %111, %112 in 1 : vector<2x241xf32>, vector<2x15xf32> -> vector<2x256xf32>
    %114 = vector.broadcast %0 : vector<1x256xf32> to vector<2x256xf32>
    %115 = arith.mulf %113, %114 : vector<2x256xf32>
    %116 = vector.extract_strided_slice %85 {offsets = [0, 16], sizes = [2, 240], strides = [1, 1]} : vector<2x256xf32> to vector<2x240xf32>
    %cst_56 = arith.constant 0.000000e+00 : f32
    %117 = vector.broadcast %cst_56 : f32 to vector<2x16xf32>
    %118 = tpu.concatenate %116, %117 in 1 : vector<2x240xf32>, vector<2x16xf32> -> vector<2x256xf32>
    %119 = vector.extract_strided_slice %85 {offsets = [0, 17], sizes = [2, 239], strides = [1, 1]} : vector<2x256xf32> to vector<2x239xf32>
    %cst_57 = arith.constant 0.000000e+00 : f32
    %120 = vector.broadcast %cst_57 : f32 to vector<2x17xf32>
    %121 = tpu.concatenate %119, %120 in 1 : vector<2x239xf32>, vector<2x17xf32> -> vector<2x256xf32>
    %122 = vector.broadcast %1 : vector<1x256xf32> to vector<2x256xf32>
    %123 = arith.mulf %121, %122 : vector<2x256xf32>
    %124 = tpu.concatenate %92, %95, %100, %105, %85, %110, %115, %118, %123 in 0 : vector<2x256xf32>, vector<2x256xf32>, vector<2x256xf32>, vector<2x256xf32>, vector<2x256xf32>, vector<2x256xf32>, vector<2x256xf32>, vector<2x256xf32>, vector<2x256xf32> -> vector<18x256xf32>
    %125 = arith.truncf %124 : vector<18x256xf32> to vector<18x256xbf16>
    %cst_58 = arith.constant dense<0.000000e+00> : vector<4x256xf32>
    %126 = tpu.matmul %87, %125, %cst_58 {dimension_numbers = #tpu.dot_dimension_numbers<[1], [0], [0], [1], [0, 0, 1, 1], [], []>} : vector<4x18xbf16>, vector<18x256xbf16>, vector<4x256xf32> -> vector<4x256xf32>
    %c0_59 = arith.constant 0 : index
    %c0_60 = arith.constant 0 : index
    %c0_61 = arith.constant 0 : index
    %127 = vector.load %arg15[%c0_59, %c0_60, %c0_61] : memref<2x4x1xf32, #tpu.memory_space<vmem>>, vector<1x4x1xf32>
    %128 = vector.shape_cast %127 : vector<1x4x1xf32> to vector<4x1xf32>
    %c0_62 = arith.constant 0 : index
    %c0_63 = arith.constant 0 : index
    %c0_64 = arith.constant 0 : index
    %129 = vector.load %arg16[%c0_62, %c0_63, %c0_64] : memref<2x4x1xf32, #tpu.memory_space<vmem>>, vector<1x4x1xf32>
    %130 = vector.shape_cast %129 : vector<1x4x1xf32> to vector<4x1xf32>
    %131 = vector.broadcast %128 : vector<4x1xf32> to vector<4x256xf32>
    %132 = arith.mulf %126, %131 : vector<4x256xf32>
    %133 = vector.broadcast %130 : vector<4x1xf32> to vector<4x256xf32>
    %134 = arith.addf %132, %133 : vector<4x256xf32>
    %cst_65 = arith.constant 2.000000e+01 : f32
    %135 = vector.broadcast %cst_65 : f32 to vector<4x256xf32>
    %136 = arith.minimumf %134, %135 : vector<4x256xf32>
    %137 = math.exp %136 : vector<4x256xf32>
    %cst_66 = arith.constant 2.000000e+00 : f32
    %138 = vector.broadcast %cst_66 : f32 to vector<4x256xf32>
    %139 = arith.addf %137, %138 : vector<4x256xf32>
    %140 = arith.mulf %137, %139 : vector<4x256xf32>
    %cst_67 = arith.constant 2.000000e+00 : f32
    %141 = vector.broadcast %cst_67 : f32 to vector<4x256xf32>
    %142 = arith.addf %140, %141 : vector<4x256xf32>
    %143 = tpu.reciprocal %142 {approx = true} : vector<4x256xf32> -> vector<4x256xf32>
    %144 = arith.mulf %140, %143 : vector<4x256xf32>
    %145 = arith.mulf %134, %144 : vector<4x256xf32>
    %146 = arith.addf %62, %145 : vector<4x256xf32>
    %c1_68 = arith.constant 1 : index
    %c0_69 = arith.constant 0 : index
    %c0_70 = arith.constant 0 : index
    %147 = vector.load %arg11[%c1_68, %c0_69, %c0_70] : memref<2x2x4xbf16, #tpu.memory_space<vmem>>, vector<1x2x4xbf16>
    %148 = vector.shape_cast %147 : vector<1x2x4xbf16> to vector<2x4xbf16>
    %149 = arith.truncf %146 : vector<4x256xf32> to vector<4x256xbf16>
    %cst_71 = arith.constant dense<0.000000e+00> : vector<2x256xf32>
    %150 = tpu.matmul %148, %149, %cst_71 {dimension_numbers = #tpu.dot_dimension_numbers<[1], [0], [0], [1], [0, 0, 1, 1], [], []>} : vector<2x4xbf16>, vector<4x256xbf16>, vector<2x256xf32> -> vector<2x256xf32>
    %c1_72 = arith.constant 1 : index
    %c0_73 = arith.constant 0 : index
    %c0_74 = arith.constant 0 : index
    %151 = vector.load %arg12[%c1_72, %c0_73, %c0_74] : memref<2x2x1xf32, #tpu.memory_space<vmem>>, vector<1x2x1xf32>
    %152 = vector.shape_cast %151 : vector<1x2x1xf32> to vector<2x1xf32>
    %c1_75 = arith.constant 1 : index
    %c0_76 = arith.constant 0 : index
    %c0_77 = arith.constant 0 : index
    %153 = vector.load %arg13[%c1_75, %c0_76, %c0_77] : memref<2x2x1xf32, #tpu.memory_space<vmem>>, vector<1x2x1xf32>
    %154 = vector.shape_cast %153 : vector<1x2x1xf32> to vector<2x1xf32>
    %155 = vector.broadcast %152 : vector<2x1xf32> to vector<2x256xf32>
    %156 = arith.mulf %150, %155 : vector<2x256xf32>
    %157 = vector.broadcast %154 : vector<2x1xf32> to vector<2x256xf32>
    %158 = arith.addf %156, %157 : vector<2x256xf32>
    %cst_78 = arith.constant 2.000000e+01 : f32
    %159 = vector.broadcast %cst_78 : f32 to vector<2x256xf32>
    %160 = arith.minimumf %158, %159 : vector<2x256xf32>
    %161 = math.exp %160 : vector<2x256xf32>
    %cst_79 = arith.constant 2.000000e+00 : f32
    %162 = vector.broadcast %cst_79 : f32 to vector<2x256xf32>
    %163 = arith.addf %161, %162 : vector<2x256xf32>
    %164 = arith.mulf %161, %163 : vector<2x256xf32>
    %cst_80 = arith.constant 2.000000e+00 : f32
    %165 = vector.broadcast %cst_80 : f32 to vector<2x256xf32>
    %166 = arith.addf %164, %165 : vector<2x256xf32>
    %167 = tpu.reciprocal %166 {approx = true} : vector<2x256xf32> -> vector<2x256xf32>
    %168 = arith.mulf %164, %167 : vector<2x256xf32>
    %169 = arith.mulf %158, %168 : vector<2x256xf32>
    %c1_81 = arith.constant 1 : index
    %c0_82 = arith.constant 0 : index
    %c0_83 = arith.constant 0 : index
    %170 = vector.load %arg14[%c1_81, %c0_82, %c0_83] : memref<2x4x18xbf16, #tpu.memory_space<vmem>>, vector<1x4x18xbf16>
    %171 = vector.shape_cast %170 : vector<1x4x18xbf16> to vector<4x18xbf16>
    %cst_84 = arith.constant 0.000000e+00 : f32
    %172 = vector.broadcast %cst_84 : f32 to vector<2x17xf32>
    %173 = vector.extract_strided_slice %169 {offsets = [0, 0], sizes = [2, 239], strides = [1, 1]} : vector<2x256xf32> to vector<2x239xf32>
    %174 = tpu.concatenate %172, %173 in 1 : vector<2x17xf32>, vector<2x239xf32> -> vector<2x256xf32>
    %175 = vector.broadcast %0 : vector<1x256xf32> to vector<2x256xf32>
    %176 = arith.mulf %174, %175 : vector<2x256xf32>
    %cst_85 = arith.constant 0.000000e+00 : f32
    %177 = vector.broadcast %cst_85 : f32 to vector<2x16xf32>
    %178 = vector.extract_strided_slice %169 {offsets = [0, 0], sizes = [2, 240], strides = [1, 1]} : vector<2x256xf32> to vector<2x240xf32>
    %179 = tpu.concatenate %177, %178 in 1 : vector<2x16xf32>, vector<2x240xf32> -> vector<2x256xf32>
    %cst_86 = arith.constant 0.000000e+00 : f32
    %180 = vector.broadcast %cst_86 : f32 to vector<2x15xf32>
    %181 = vector.extract_strided_slice %169 {offsets = [0, 0], sizes = [2, 241], strides = [1, 1]} : vector<2x256xf32> to vector<2x241xf32>
    %182 = tpu.concatenate %180, %181 in 1 : vector<2x15xf32>, vector<2x241xf32> -> vector<2x256xf32>
    %183 = vector.broadcast %1 : vector<1x256xf32> to vector<2x256xf32>
    %184 = arith.mulf %182, %183 : vector<2x256xf32>
    %cst_87 = arith.constant 0.000000e+00 : f32
    %185 = vector.broadcast %cst_87 : f32 to vector<2x1xf32>
    %186 = vector.extract_strided_slice %169 {offsets = [0, 0], sizes = [2, 255], strides = [1, 1]} : vector<2x256xf32> to vector<2x255xf32>
    %187 = tpu.concatenate %185, %186 in 1 : vector<2x1xf32>, vector<2x255xf32> -> vector<2x256xf32>
    %188 = vector.broadcast %0 : vector<1x256xf32> to vector<2x256xf32>
    %189 = arith.mulf %187, %188 : vector<2x256xf32>
    %190 = vector.extract_strided_slice %169 {offsets = [0, 1], sizes = [2, 255], strides = [1, 1]} : vector<2x256xf32> to vector<2x255xf32>
    %cst_88 = arith.constant 0.000000e+00 : f32
    %191 = vector.broadcast %cst_88 : f32 to vector<2x1xf32>
    %192 = tpu.concatenate %190, %191 in 1 : vector<2x255xf32>, vector<2x1xf32> -> vector<2x256xf32>
    %193 = vector.broadcast %1 : vector<1x256xf32> to vector<2x256xf32>
    %194 = arith.mulf %192, %193 : vector<2x256xf32>
    %195 = vector.extract_strided_slice %169 {offsets = [0, 15], sizes = [2, 241], strides = [1, 1]} : vector<2x256xf32> to vector<2x241xf32>
    %cst_89 = arith.constant 0.000000e+00 : f32
    %196 = vector.broadcast %cst_89 : f32 to vector<2x15xf32>
    %197 = tpu.concatenate %195, %196 in 1 : vector<2x241xf32>, vector<2x15xf32> -> vector<2x256xf32>
    %198 = vector.broadcast %0 : vector<1x256xf32> to vector<2x256xf32>
    %199 = arith.mulf %197, %198 : vector<2x256xf32>
    %200 = vector.extract_strided_slice %169 {offsets = [0, 16], sizes = [2, 240], strides = [1, 1]} : vector<2x256xf32> to vector<2x240xf32>
    %cst_90 = arith.constant 0.000000e+00 : f32
    %201 = vector.broadcast %cst_90 : f32 to vector<2x16xf32>
    %202 = tpu.concatenate %200, %201 in 1 : vector<2x240xf32>, vector<2x16xf32> -> vector<2x256xf32>
    %203 = vector.extract_strided_slice %169 {offsets = [0, 17], sizes = [2, 239], strides = [1, 1]} : vector<2x256xf32> to vector<2x239xf32>
    %cst_91 = arith.constant 0.000000e+00 : f32
    %204 = vector.broadcast %cst_91 : f32 to vector<2x17xf32>
    %205 = tpu.concatenate %203, %204 in 1 : vector<2x239xf32>, vector<2x17xf32> -> vector<2x256xf32>
    %206 = vector.broadcast %1 : vector<1x256xf32> to vector<2x256xf32>
    %207 = arith.mulf %205, %206 : vector<2x256xf32>
    %208 = tpu.concatenate %176, %179, %184, %189, %169, %194, %199, %202, %207 in 0 : vector<2x256xf32>, vector<2x256xf32>, vector<2x256xf32>, vector<2x256xf32>, vector<2x256xf32>, vector<2x256xf32>, vector<2x256xf32>, vector<2x256xf32>, vector<2x256xf32> -> vector<18x256xf32>
    %209 = arith.truncf %208 : vector<18x256xf32> to vector<18x256xbf16>
    %cst_92 = arith.constant dense<0.000000e+00> : vector<4x256xf32>
    %210 = tpu.matmul %171, %209, %cst_92 {dimension_numbers = #tpu.dot_dimension_numbers<[1], [0], [0], [1], [0, 0, 1, 1], [], []>} : vector<4x18xbf16>, vector<18x256xbf16>, vector<4x256xf32> -> vector<4x256xf32>
    %c1_93 = arith.constant 1 : index
    %c0_94 = arith.constant 0 : index
    %c0_95 = arith.constant 0 : index
    %211 = vector.load %arg15[%c1_93, %c0_94, %c0_95] : memref<2x4x1xf32, #tpu.memory_space<vmem>>, vector<1x4x1xf32>
    %212 = vector.shape_cast %211 : vector<1x4x1xf32> to vector<4x1xf32>
    %c1_96 = arith.constant 1 : index
    %c0_97 = arith.constant 0 : index
    %c0_98 = arith.constant 0 : index
    %213 = vector.load %arg16[%c1_96, %c0_97, %c0_98] : memref<2x4x1xf32, #tpu.memory_space<vmem>>, vector<1x4x1xf32>
    %214 = vector.shape_cast %213 : vector<1x4x1xf32> to vector<4x1xf32>
    %215 = vector.broadcast %212 : vector<4x1xf32> to vector<4x256xf32>
    %216 = arith.mulf %210, %215 : vector<4x256xf32>
    %217 = vector.broadcast %214 : vector<4x1xf32> to vector<4x256xf32>
    %218 = arith.addf %216, %217 : vector<4x256xf32>
    %cst_99 = arith.constant 2.000000e+01 : f32
    %219 = vector.broadcast %cst_99 : f32 to vector<4x256xf32>
    %220 = arith.minimumf %218, %219 : vector<4x256xf32>
    %221 = math.exp %220 : vector<4x256xf32>
    %cst_100 = arith.constant 2.000000e+00 : f32
    %222 = vector.broadcast %cst_100 : f32 to vector<4x256xf32>
    %223 = arith.addf %221, %222 : vector<4x256xf32>
    %224 = arith.mulf %221, %223 : vector<4x256xf32>
    %cst_101 = arith.constant 2.000000e+00 : f32
    %225 = vector.broadcast %cst_101 : f32 to vector<4x256xf32>
    %226 = arith.addf %224, %225 : vector<4x256xf32>
    %227 = tpu.reciprocal %226 {approx = true} : vector<4x256xf32> -> vector<4x256xf32>
    %228 = arith.mulf %224, %227 : vector<4x256xf32>
    %229 = arith.mulf %218, %228 : vector<4x256xf32>
    %230 = arith.addf %146, %229 : vector<4x256xf32>
    %c0_102 = arith.constant 0 : index
    %c0_103 = arith.constant 0 : index
    %231 = vector.load %arg17[%c0_102, %c0_103] : memref<4x4xbf16, #tpu.memory_space<vmem>>, vector<4x4xbf16>
    %232 = arith.truncf %230 : vector<4x256xf32> to vector<4x256xbf16>
    %cst_104 = arith.constant dense<0.000000e+00> : vector<4x256xf32>
    %233 = tpu.matmul %231, %232, %cst_104 {dimension_numbers = #tpu.dot_dimension_numbers<[1], [0], [0], [1], [0, 0, 1, 1], [], []>} : vector<4x4xbf16>, vector<4x256xbf16>, vector<4x256xf32> -> vector<4x256xf32>
    %c0_105 = arith.constant 0 : index
    %c0_106 = arith.constant 0 : index
    %234 = vector.load %arg18[%c0_105, %c0_106] : memref<4x1xf32, #tpu.memory_space<vmem>>, vector<4x1xf32>
    %c0_107 = arith.constant 0 : index
    %c0_108 = arith.constant 0 : index
    %235 = vector.load %arg19[%c0_107, %c0_108] : memref<4x1xf32, #tpu.memory_space<vmem>>, vector<4x1xf32>
    %236 = vector.broadcast %234 : vector<4x1xf32> to vector<4x256xf32>
    %237 = arith.mulf %233, %236 : vector<4x256xf32>
    %238 = vector.broadcast %235 : vector<4x1xf32> to vector<4x256xf32>
    %239 = arith.addf %237, %238 : vector<4x256xf32>
    %cst_109 = arith.constant 2.000000e+01 : f32
    %240 = vector.broadcast %cst_109 : f32 to vector<4x256xf32>
    %241 = arith.minimumf %239, %240 : vector<4x256xf32>
    %242 = math.exp %241 : vector<4x256xf32>
    %cst_110 = arith.constant 2.000000e+00 : f32
    %243 = vector.broadcast %cst_110 : f32 to vector<4x256xf32>
    %244 = arith.addf %242, %243 : vector<4x256xf32>
    %245 = arith.mulf %242, %244 : vector<4x256xf32>
    %cst_111 = arith.constant 2.000000e+00 : f32
    %246 = vector.broadcast %cst_111 : f32 to vector<4x256xf32>
    %247 = arith.addf %245, %246 : vector<4x256xf32>
    %248 = tpu.reciprocal %247 {approx = true} : vector<4x256xf32> -> vector<4x256xf32>
    %249 = arith.mulf %245, %248 : vector<4x256xf32>
    %250 = arith.mulf %239, %249 : vector<4x256xf32>
    %251 = tpu.concatenate %42, %250 in 0 : vector<4x256xf32>, vector<4x256xf32> -> vector<8x256xf32>
    %c0_112 = arith.constant 0 : index
    %c0_113 = arith.constant 0 : index
    %c0_114 = arith.constant 0 : index
    %252 = vector.load %arg21[%c0_112, %c0_113, %c0_114] : memref<1x8x256xf32, #tpu.memory_space<vmem>>, vector<1x8x256xf32>
    %253 = vector.shape_cast %252 : vector<1x8x256xf32> to vector<8x256xf32>
    %254 = vector.shape_cast %251 : vector<8x256xf32> to vector<1x8x256xf32>
    tpu.vector_store %arg21[%c0_112, %c0_113, %c0_114], %254 {strides = array<i32>} : memref<1x8x256xf32, #tpu.memory_space<vmem>>, vector<1x8x256xf32>,
    return
  }
  func.func @transform_0(%arg0: i32) -> (i32, i32, i32) {
    %c0_i32 = arith.constant 0 : i32
    %c0_i32_0 = arith.constant 0 : i32
    %c0_i32_1 = arith.constant 0 : i32
    return %arg0, %c0_i32, %c0_i32_0 : i32, i32, i32
  }
  func.func @transform_1(%arg0: i32) -> (i32, i32) {
    %c0_i32 = arith.constant 0 : i32
    %c0_i32_0 = arith.constant 0 : i32
    %c0_i32_1 = arith.constant 0 : i32
    return %c0_i32, %c0_i32_0 : i32, i32
  }
  func.func @transform_2(%arg0: i32) -> (i32, i32) {
    %c0_i32 = arith.constant 0 : i32
    %c0_i32_0 = arith.constant 0 : i32
    %c0_i32_1 = arith.constant 0 : i32
    return %c0_i32, %c0_i32_0 : i32, i32
  }
  func.func @transform_3(%arg0: i32) -> (i32, i32) {
    %c0_i32 = arith.constant 0 : i32
    %c0_i32_0 = arith.constant 0 : i32
    %c0_i32_1 = arith.constant 0 : i32
    return %c0_i32, %c0_i32_0 : i32, i32
  }
  func.func @transform_4(%arg0: i32) -> (i32, i32) {
    %c0_i32 = arith.constant 0 : i32
    %c0_i32_0 = arith.constant 0 : i32
    %c0_i32_1 = arith.constant 0 : i32
    return %c0_i32, %c0_i32_0 : i32, i32
  }
  func.func @transform_5(%arg0: i32) -> (i32, i32) {
    %c0_i32 = arith.constant 0 : i32
    %c0_i32_0 = arith.constant 0 : i32
    %c0_i32_1 = arith.constant 0 : i32
    return %c0_i32, %c0_i32_0 : i32, i32
  }
  func.func @transform_6(%arg0: i32) -> (i32, i32) {
    %c0_i32 = arith.constant 0 : i32
    %c0_i32_0 = arith.constant 0 : i32
    %c0_i32_1 = arith.constant 0 : i32
    return %c0_i32, %c0_i32_0 : i32, i32
  }
  func.func @transform_7(%arg0: i32) -> (i32, i32) {
    %c0_i32 = arith.constant 0 : i32
    %c0_i32_0 = arith.constant 0 : i32
    %c0_i32_1 = arith.constant 0 : i32
    return %c0_i32, %c0_i32_0 : i32, i32
  }
  func.func @transform_8(%arg0: i32) -> (i32, i32) {
    %c0_i32 = arith.constant 0 : i32
    %c0_i32_0 = arith.constant 0 : i32
    %c0_i32_1 = arith.constant 0 : i32
    return %c0_i32, %c0_i32_0 : i32, i32
  }
  func.func @transform_9(%arg0: i32) -> (i32, i32) {
    %c0_i32 = arith.constant 0 : i32
    %c0_i32_0 = arith.constant 0 : i32
    %c0_i32_1 = arith.constant 0 : i32
    return %c0_i32, %c0_i32_0 : i32, i32
  }
  func.func @transform_10(%arg0: i32) -> (i32, i32, i32) {
    %c0_i32 = arith.constant 0 : i32
    %c0_i32_0 = arith.constant 0 : i32
    %c0_i32_1 = arith.constant 0 : i32
    %c0_i32_2 = arith.constant 0 : i32
    return %c0_i32, %c0_i32_0, %c0_i32_1 : i32, i32, i32
  }
  func.func @transform_11(%arg0: i32) -> (i32, i32, i32) {
    %c0_i32 = arith.constant 0 : i32
    %c0_i32_0 = arith.constant 0 : i32
    %c0_i32_1 = arith.constant 0 : i32
    %c0_i32_2 = arith.constant 0 : i32
    return %c0_i32, %c0_i32_0, %c0_i32_1 : i32, i32, i32
  }
  func.func @transform_12(%arg0: i32) -> (i32, i32, i32) {
    %c0_i32 = arith.constant 0 : i32
    %c0_i32_0 = arith.constant 0 : i32
    %c0_i32_1 = arith.constant 0 : i32
    %c0_i32_2 = arith.constant 0 : i32
    return %c0_i32, %c0_i32_0, %c0_i32_1 : i32, i32, i32
  }
  func.func @transform_13(%arg0: i32) -> (i32, i32, i32) {
    %c0_i32 = arith.constant 0 : i32
    %c0_i32_0 = arith.constant 0 : i32
    %c0_i32_1 = arith.constant 0 : i32
    %c0_i32_2 = arith.constant 0 : i32
    return %c0_i32, %c0_i32_0, %c0_i32_1 : i32, i32, i32
  }
  func.func @transform_14(%arg0: i32) -> (i32, i32, i32) {
    %c0_i32 = arith.constant 0 : i32
    %c0_i32_0 = arith.constant 0 : i32
    %c0_i32_1 = arith.constant 0 : i32
    %c0_i32_2 = arith.constant 0 : i32
    return %c0_i32, %c0_i32_0, %c0_i32_1 : i32, i32, i32
  }
  func.func @transform_15(%arg0: i32) -> (i32, i32, i32) {
    %c0_i32 = arith.constant 0 : i32
    %c0_i32_0 = arith.constant 0 : i32
    %c0_i32_1 = arith.constant 0 : i32
    %c0_i32_2 = arith.constant 0 : i32
    return %c0_i32, %c0_i32_0, %c0_i32_1 : i32, i32, i32
  }
  func.func @transform_16(%arg0: i32) -> (i32, i32) {
    %c0_i32 = arith.constant 0 : i32
    %c0_i32_0 = arith.constant 0 : i32
    %c0_i32_1 = arith.constant 0 : i32
    return %c0_i32, %c0_i32_0 : i32, i32
  }
  func.func @transform_17(%arg0: i32) -> (i32, i32) {
    %c0_i32 = arith.constant 0 : i32
    %c0_i32_0 = arith.constant 0 : i32
    %c0_i32_1 = arith.constant 0 : i32
    return %c0_i32, %c0_i32_0 : i32, i32
  }
  func.func @transform_18(%arg0: i32) -> (i32, i32) {
    %c0_i32 = arith.constant 0 : i32
    %c0_i32_0 = arith.constant 0 : i32
    %c0_i32_1 = arith.constant 0 : i32
    return %c0_i32, %c0_i32_0 : i32, i32
  }
  func.func @transform_19(%arg0: i32) -> (i32, i32) {
    %c0_i32 = arith.constant 0 : i32
    %c0_i32_0 = arith.constant 0 : i32
    %c0_i32_1 = arith.constant 0 : i32
    return %c0_i32, %c0_i32_0 : i32, i32
  }
  func.func @transform_20(%arg0: i32) -> (i32, i32, i32) {
    %c0_i32 = arith.constant 0 : i32
    %c0_i32_0 = arith.constant 0 : i32
    %c0_i32_1 = arith.constant 0 : i32
    return %arg0, %c0_i32, %c0_i32_0 : i32, i32, i32
  }
}

</mosaic_0001>

<llo_original>
// kernel: tpu_custom_call.1
$region0: #{tpu_custom_call.1}
  #allocation0 [shape = 'u32[]', space=smem, size = 0x4, offset = 0x4, fixed_abs, tag = 'smem constant byte address 0x4 - core index']
  #allocation1 [shape = 'u32[144,128]{1,0:T(1,128)}', space=vmem, size = 0x12000, scoped, tag = 'internal scratch']
  %s0 = inlined_call_operand.vmem [shape: bf16[2,36,256], index: 0, kind: input, shape index: {}]
  %s1 = inlined_call_operand.vmem [shape: bf16[8,36], index: 1, kind: input, shape index: {}]
  %s2 = inlined_call_operand.vmem [shape: f32[8,1], index: 2, kind: input, shape index: {}]
  %s3 = inlined_call_operand.vmem [shape: f32[8,1], index: 3, kind: input, shape index: {}]
  %s4 = inlined_call_operand.vmem [shape: bf16[4,8], index: 4, kind: input, shape index: {}]
  %s5 = inlined_call_operand.vmem [shape: f32[4,1], index: 5, kind: input, shape index: {}]
  %s6 = inlined_call_operand.vmem [shape: f32[4,1], index: 6, kind: input, shape index: {}]
  %s7 = inlined_call_operand.vmem [shape: bf16[4,8], index: 7, kind: input, shape index: {}]
  %s8 = inlined_call_operand.vmem [shape: f32[4,1], index: 8, kind: input, shape index: {}]
  %s9 = inlined_call_operand.vmem [shape: f32[4,1], index: 9, kind: input, shape index: {}]
  %s10 = inlined_call_operand.vmem [shape: bf16[2,2,4], index: 10, kind: input, shape index: {}]
  %s11 = inlined_call_operand.vmem [shape: f32[2,2,1], index: 11, kind: input, shape index: {}]
  %s12 = inlined_call_operand.vmem [shape: f32[2,2,1], index: 12, kind: input, shape index: {}]
  %s13 = inlined_call_operand.vmem [shape: bf16[2,4,18], index: 13, kind: input, shape index: {}]
  %s14 = inlined_call_operand.vmem [shape: f32[2,4,1], index: 14, kind: input, shape index: {}]
  %s15 = inlined_call_operand.vmem [shape: f32[2,4,1], index: 15, kind: input, shape index: {}]
  %s16 = inlined_call_operand.vmem [shape: bf16[4,4], index: 16, kind: input, shape index: {}]
  %s17 = inlined_call_operand.vmem [shape: f32[4,1], index: 17, kind: input, shape index: {}]
  %s18 = inlined_call_operand.vmem [shape: f32[4,1], index: 18, kind: input, shape index: {}]
  %s19 = inlined_call_operand.vmem [shape: f32[2,256], index: 19, kind: input, shape index: {}]
  %s20 = inlined_call_operand.hbm [shape: f32[2,8,256], index: 20, kind: output, shape index: {}]
  %s21 = sld [smem:[#allocation0]]
  $region113: #{tpu_custom_call.1} parent=0
    _
  %s23 = ssub.s32 1, %s21
  %s24 = scalar_select 0, %s23, %s21
  $region1: #{tpu_custom_call.1} parent=0
    #allocation2 [shape = 'u8[16384]{0}', space=vmem, size = 0x4000, scoped, tag = 'output window, operand 0']
    #allocation3 [shape = 's32[2]{0}', space=sflag, size = 0x8, scoped, tag = 'scoped memory for tpu_custom_call.1']
    %25 = vsyncpa [#allocation3], 0
    %s26 = scalar_lea.sflag [#allocation3], 1
    %27 = vsyncpa %s26, 0
    loop: start=0, step=1, limit=4
    $region2: #{tpu_custom_call.1} parent=1 // loop_pre_header
      _
    $region3: #{tpu_custom_call.1} parent=1 // loop_header
      %s29 = sphi 0, %s33
      %p30 = scmp.ge.s32.totalorder %s29, 4
      %s39 = sphi 0, %s41
      %s42 = sphi 0, %s39
      %s43 = sphi 0, %s42
      %s59 = sphi 0, %s43
      %s63 = sphi 0, %s63
      %s65 = sphi 0, %s63
      %s66 = sphi 0, %s65
      %s80 = sphi 0, %s66
      %s84 = sphi 0, %s84
      %s86 = sphi 0, %s84
      %s87 = sphi 0, %s86
      %s101 = sphi 0, %s87
      %s105 = sphi 0, %s105
      %s107 = sphi 0, %s105
      %s108 = sphi 0, %s107
      %s122 = sphi 0, %s108
      %s126 = sphi 0, %s126
      %s128 = sphi 0, %s126
      %s129 = sphi 0, %s128
      %s143 = sphi 0, %s129
      %s147 = sphi 0, %s147
      %s149 = sphi 0, %s147
      %s150 = sphi 0, %s149
      %s164 = sphi 0, %s150
      %s168 = sphi 0, %s168
      %s170 = sphi 0, %s168
      %s171 = sphi 0, %s170
      %s185 = sphi 0, %s171
      %s189 = sphi 0, %s189
      %s191 = sphi 0, %s189
      %s192 = sphi 0, %s191
      %s206 = sphi 0, %s192
      %s210 = sphi 0, %s210
      %s212 = sphi 0, %s210
      %s213 = sphi 0, %s212
      %s227 = sphi 0, %s213
      %s231 = sphi 0, %s231
      %s233 = sphi 0, %s231
      %s234 = sphi 0, %s233
      %s248 = sphi 0, %s234
      %s252 = sphi 0, %s252
      %s254 = sphi 0, %s252
      %s255 = sphi 0, %s254
      %s269 = sphi 0, %s255
      %s273 = sphi 0, %s273
      %s275 = sphi 0, %s273
      %s276 = sphi 0, %s275
      %s290 = sphi 0, %s276
      %s294 = sphi 0, %s294
      %s296 = sphi 0, %s294
      %s297 = sphi 0, %s296
      %s311 = sphi 0, %s297
      %s315 = sphi 0, %s315
      %s317 = sphi 0, %s315
      %s318 = sphi 0, %s317
      %s332 = sphi 0, %s318
      %s336 = sphi 0, %s336
      %s338 = sphi 0, %s336
      %s339 = sphi 0, %s338
      %s353 = sphi 0, %s339
      %s357 = sphi 0, %s357
      %s359 = sphi 0, %s357
      %s360 = sphi 0, %s359
      %s374 = sphi 0, %s360
      %s378 = sphi 0, %s378
      %s380 = sphi 0, %s378
      %s381 = sphi 0, %s380
      %s395 = sphi 0, %s381
      %s399 = sphi 0, %s399
      %s401 = sphi 0, %s399
      %s402 = sphi 0, %s401
      %s416 = sphi 0, %s402
      %s420 = sphi 0, %s420
      %s422 = sphi 0, %s420
      %s423 = sphi 0, %s422
      %s437 = sphi 0, %s423
      %s441 = sphi 0, %s441
      %s443 = sphi 0, %s441
      %s444 = sphi 0, %s443
      %s458 = sphi 0, %s444
      %s464 = sphi 0, %s466
      %s467 = sphi 0, %s464
      %s468 = sphi 0, %s467
      %s484 = sphi 0, %s468
    $region4: #{tpu_custom_call.1} parent=1 // loop_header_branch
      %32 = sbr.rel (%p30) target = $region8
    $region5: #{tpu_custom_call.1} parent=1 // loop_body
      %s34 = ssub.s32 %s29, 1
      %s35 = ssub.s32 %s29, 2
      %s36 = sadd.s32 %s29, 1
      %s37 = ssub.s32 %s29, %s36
      %p38 = scmp.eq.s32.totalorder %s37, 0
      %s40 = sadd.s32 %s39, 1
      %s41 = scalar_select %p38, %s39, %s40
      %p44 = pneg %p38
      %p45 = scmp.eq.s32.totalorder %s29, 1
      %p46 = por %p44, %p45
      %p47 = scmp.ne.s32.totalorder %s39, %s42
      %p48 = scmp.eq.s32.totalorder %s29, 0
      %p49 = por %p47, %p48
      %p50 = scmp.ne.s32.totalorder %s39, %s42
      %p51 = scmp.eq.s32.totalorder %s34, 1
      %p52 = por %p50, %p51
      %p53 = scmp.ne.s32.totalorder %s42, %s43
      %p54 = scmp.eq.s32.totalorder %s34, 0
      %p55 = por %p53, %p54
      %p56 = scmp.ne.s32.totalorder %s42, %s43
      %p57 = scmp.eq.s32.totalorder %s35, 1
      %p58 = por %p56, %p57
      %p60 = scmp.ne.s32.totalorder %s43, %s59
      %p61 = scmp.eq.s32.totalorder %s35, 0
      %p62 = por %p60, %p61
      %s64 = sadd.s32 %s63, 1
      %p67 = scmp.eq.s32.totalorder %s29, 1
      %p68 = scmp.ne.s32.totalorder %s63, %s65
      %p69 = scmp.eq.s32.totalorder %s29, 0
      %p70 = por %p68, %p69
      %p71 = scmp.ne.s32.totalorder %s63, %s65
      %p72 = scmp.eq.s32.totalorder %s34, 1
      %p73 = por %p71, %p72
      %p74 = scmp.ne.s32.totalorder %s65, %s66
      %p75 = scmp.eq.s32.totalorder %s34, 0
      %p76 = por %p74, %p75
      %p77 = scmp.ne.s32.totalorder %s65, %s66
      %p78 = scmp.eq.s32.totalorder %s35, 1
      %p79 = por %p77, %p78
      %p81 = scmp.ne.s32.totalorder %s66, %s80
      %p82 = scmp.eq.s32.totalorder %s35, 0
      %p83 = por %p81, %p82
      %s85 = sadd.s32 %s84, 1
      %p88 = scmp.eq.s32.totalorder %s29, 1
      %p89 = scmp.ne.s32.totalorder %s84, %s86
      %p90 = scmp.eq.s32.totalorder %s29, 0
      %p91 = por %p89, %p90
      %p92 = scmp.ne.s32.totalorder %s84, %s86
      %p93 = scmp.eq.s32.totalorder %s34, 1
      %p94 = por %p92, %p93
      %p95 = scmp.ne.s32.totalorder %s86, %s87
      %p96 = scmp.eq.s32.totalorder %s34, 0
      %p97 = por %p95, %p96
      %p98 = scmp.ne.s32.totalorder %s86, %s87
      %p99 = scmp.eq.s32.totalorder %s35, 1
      %p100 = por %p98, %p99
      %p102 = scmp.ne.s32.totalorder %s87, %s101
      %p103 = scmp.eq.s32.totalorder %s35, 0
      %p104 = por %p102, %p103
      %s106 = sadd.s32 %s105, 1
      %p109 = scmp.eq.s32.totalorder %s29, 1
      %p110 = scmp.ne.s32.totalorder %s105, %s107
      %p111 = scmp.eq.s32.totalorder %s29, 0
      %p112 = por %p110, %p111
      %p113 = scmp.ne.s32.totalorder %s105, %s107
      %p114 = scmp.eq.s32.totalorder %s34, 1
      %p115 = por %p113, %p114
      %p116 = scmp.ne.s32.totalorder %s107, %s108
      %p117 = scmp.eq.s32.totalorder %s34, 0
      %p118 = por %p116, %p117
      %p119 = scmp.ne.s32.totalorder %s107, %s108
      %p120 = scmp.eq.s32.totalorder %s35, 1
      %p121 = por %p119, %p120
      %p123 = scmp.ne.s32.totalorder %s108, %s122
      %p124 = scmp.eq.s32.totalorder %s35, 0
      %p125 = por %p123, %p124
      %s127 = sadd.s32 %s126, 1
      %p130 = scmp.eq.s32.totalorder %s29, 1
      %p131 = scmp.ne.s32.totalorder %s126, %s128
      %p132 = scmp.eq.s32.totalorder %s29, 0
      %p133 = por %p131, %p132
      %p134 = scmp.ne.s32.totalorder %s126, %s128
      %p135 = scmp.eq.s32.totalorder %s34, 1
      %p136 = por %p134, %p135
      %p137 = scmp.ne.s32.totalorder %s128, %s129
      %p138 = scmp.eq.s32.totalorder %s34, 0
      %p139 = por %p137, %p138
      %p140 = scmp.ne.s32.totalorder %s128, %s129
      %p141 = scmp.eq.s32.totalorder %s35, 1
      %p142 = por %p140, %p141
      %p144 = scmp.ne.s32.totalorder %s129, %s143
      %p145 = scmp.eq.s32.totalorder %s35, 0
      %p146 = por %p144, %p145
      %s148 = sadd.s32 %s147, 1
      %p151 = scmp.eq.s32.totalorder %s29, 1
      %p152 = scmp.ne.s32.totalorder %s147, %s149
      %p153 = scmp.eq.s32.totalorder %s29, 0
      %p154 = por %p152, %p153
      %p155 = scmp.ne.s32.totalorder %s147, %s149
      %p156 = scmp.eq.s32.totalorder %s34, 1
      %p157 = por %p155, %p156
      %p158 = scmp.ne.s32.totalorder %s149, %s150
      %p159 = scmp.eq.s32.totalorder %s34, 0
      %p160 = por %p158, %p159
      %p161 = scmp.ne.s32.totalorder %s149, %s150
      %p162 = scmp.eq.s32.totalorder %s35, 1
      %p163 = por %p161, %p162
      %p165 = scmp.ne.s32.totalorder %s150, %s164
      %p166 = scmp.eq.s32.totalorder %s35, 0
      %p167 = por %p165, %p166
      %s169 = sadd.s32 %s168, 1
      %p172 = scmp.eq.s32.totalorder %s29, 1
      %p173 = scmp.ne.s32.totalorder %s168, %s170
      %p174 = scmp.eq.s32.totalorder %s29, 0
      %p175 = por %p173, %p174
      %p176 = scmp.ne.s32.totalorder %s168, %s170
      %p177 = scmp.eq.s32.totalorder %s34, 1
      %p178 = por %p176, %p177
      %p179 = scmp.ne.s32.totalorder %s170, %s171
      %p180 = scmp.eq.s32.totalorder %s34, 0
      %p181 = por %p179, %p180
      %p182 = scmp.ne.s32.totalorder %s170, %s171
      %p183 = scmp.eq.s32.totalorder %s35, 1
      %p184 = por %p182, %p183
      %p186 = scmp.ne.s32.totalorder %s171, %s185
      %p187 = scmp.eq.s32.totalorder %s35, 0
      %p188 = por %p186, %p187
      %s190 = sadd.s32 %s189, 1
      %p193 = scmp.eq.s32.totalorder %s29, 1
      %p194 = scmp.ne.s32.totalorder %s189, %s191
      %p195 = scmp.eq.s32.totalorder %s29, 0
      %p196 = por %p194, %p195
      %p197 = scmp.ne.s32.totalorder %s189, %s191
      %p198 = scmp.eq.s32.totalorder %s34, 1
      %p199 = por %p197, %p198
      %p200 = scmp.ne.s32.totalorder %s191, %s192
      %p201 = scmp.eq.s32.totalorder %s34, 0
      %p202 = por %p200, %p201
      %p203 = scmp.ne.s32.totalorder %s191, %s192
      %p204 = scmp.eq.s32.totalorder %s35, 1
      %p205 = por %p203, %p204
      %p207 = scmp.ne.s32.totalorder %s192, %s206
      %p208 = scmp.eq.s32.totalorder %s35, 0
      %p209 = por %p207, %p208
      %s211 = sadd.s32 %s210, 1
      %p214 = scmp.eq.s32.totalorder %s29, 1
      %p215 = scmp.ne.s32.totalorder %s210, %s212
      %p216 = scmp.eq.s32.totalorder %s29, 0
      %p217 = por %p215, %p216
      %p218 = scmp.ne.s32.totalorder %s210, %s212
      %p219 = scmp.eq.s32.totalorder %s34, 1
      %p220 = por %p218, %p219
      %p221 = scmp.ne.s32.totalorder %s212, %s213
      %p222 = scmp.eq.s32.totalorder %s34, 0
      %p223 = por %p221, %p222
      %p224 = scmp.ne.s32.totalorder %s212, %s213
      %p225 = scmp.eq.s32.totalorder %s35, 1
      %p226 = por %p224, %p225
      %p228 = scmp.ne.s32.totalorder %s213, %s227
      %p229 = scmp.eq.s32.totalorder %s35, 0
      %p230 = por %p228, %p229
      %s232 = sadd.s32 %s231, 1
      %p235 = scmp.eq.s32.totalorder %s29, 1
      %p236 = scmp.ne.s32.totalorder %s231, %s233
      %p237 = scmp.eq.s32.totalorder %s29, 0
      %p238 = por %p236, %p237
      %p239 = scmp.ne.s32.totalorder %s231, %s233
      %p240 = scmp.eq.s32.totalorder %s34, 1
      %p241 = por %p239, %p240
      %p242 = scmp.ne.s32.totalorder %s233, %s234
      %p243 = scmp.eq.s32.totalorder %s34, 0
      %p244 = por %p242, %p243
      %p245 = scmp.ne.s32.totalorder %s233, %s234
      %p246 = scmp.eq.s32.totalorder %s35, 1
      %p247 = por %p245, %p246
      %p249 = scmp.ne.s32.totalorder %s234, %s248
      %p250 = scmp.eq.s32.totalorder %s35, 0
      %p251 = por %p249, %p250
      %s253 = sadd.s32 %s252, 1
      %p256 = scmp.eq.s32.totalorder %s29, 1
      %p257 = scmp.ne.s32.totalorder %s252, %s254
      %p258 = scmp.eq.s32.totalorder %s29, 0
      %p259 = por %p257, %p258
      %p260 = scmp.ne.s32.totalorder %s252, %s254
      %p261 = scmp.eq.s32.totalorder %s34, 1
      %p262 = por %p260, %p261
      %p263 = scmp.ne.s32.totalorder %s254, %s255
      %p264 = scmp.eq.s32.totalorder %s34, 0
      %p265 = por %p263, %p264
      %p266 = scmp.ne.s32.totalorder %s254, %s255
      %p267 = scmp.eq.s32.totalorder %s35, 1
      %p268 = por %p266, %p267
      %p270 = scmp.ne.s32.totalorder %s255, %s269
      %p271 = scmp.eq.s32.totalorder %s35, 0
      %p272 = por %p270, %p271
      %s274 = sadd.s32 %s273, 1
      %p277 = scmp.eq.s32.totalorder %s29, 1
      %p278 = scmp.ne.s32.totalorder %s273, %s275
      %p279 = scmp.eq.s32.totalorder %s29, 0
      %p280 = por %p278, %p279
      %p281 = scmp.ne.s32.totalorder %s273, %s275
      %p282 = scmp.eq.s32.totalorder %s34, 1
      %p283 = por %p281, %p282
      %p284 = scmp.ne.s32.totalorder %s275, %s276
      %p285 = scmp.eq.s32.totalorder %s34, 0
      %p286 = por %p284, %p285
      %p287 = scmp.ne.s32.totalorder %s275, %s276
      %p288 = scmp.eq.s32.totalorder %s35, 1
      %p289 = por %p287, %p288
      %p291 = scmp.ne.s32.totalorder %s276, %s290
      %p292 = scmp.eq.s32.totalorder %s35, 0
      %p293 = por %p291, %p292
      %s295 = sadd.s32 %s294, 1
      %p298 = scmp.eq.s32.totalorder %s29, 1
      %p299 = scmp.ne.s32.totalorder %s294, %s296
      %p300 = scmp.eq.s32.totalorder %s29, 0
      %p301 = por %p299, %p300
      %p302 = scmp.ne.s32.totalorder %s294, %s296
      %p303 = scmp.eq.s32.totalorder %s34, 1
      %p304 = por %p302, %p303
      %p305 = scmp.ne.s32.totalorder %s296, %s297
      %p306 = scmp.eq.s32.totalorder %s34, 0
      %p307 = por %p305, %p306
      %p308 = scmp.ne.s32.totalorder %s296, %s297
      %p309 = scmp.eq.s32.totalorder %s35, 1
      %p310 = por %p308, %p309
      %p312 = scmp.ne.s32.totalorder %s297, %s311
      %p313 = scmp.eq.s32.totalorder %s35, 0
      %p314 = por %p312, %p313
      %s316 = sadd.s32 %s315, 1
      %p319 = scmp.eq.s32.totalorder %s29, 1
      %p320 = scmp.ne.s32.totalorder %s315, %s317
      %p321 = scmp.eq.s32.totalorder %s29, 0
      %p322 = por %p320, %p321
      %p323 = scmp.ne.s32.totalorder %s315, %s317
      %p324 = scmp.eq.s32.totalorder %s34, 1
      %p325 = por %p323, %p324
      %p326 = scmp.ne.s32.totalorder %s317, %s318
      %p327 = scmp.eq.s32.totalorder %s34, 0
      %p328 = por %p326, %p327
      %p329 = scmp.ne.s32.totalorder %s317, %s318
      %p330 = scmp.eq.s32.totalorder %s35, 1
      %p331 = por %p329, %p330
      %p333 = scmp.ne.s32.totalorder %s318, %s332
      %p334 = scmp.eq.s32.totalorder %s35, 0
      %p335 = por %p333, %p334
      %s337 = sadd.s32 %s336, 1
      %p340 = scmp.eq.s32.totalorder %s29, 1
      %p341 = scmp.ne.s32.totalorder %s336, %s338
      %p342 = scmp.eq.s32.totalorder %s29, 0
      %p343 = por %p341, %p342
      %p344 = scmp.ne.s32.totalorder %s336, %s338
      %p345 = scmp.eq.s32.totalorder %s34, 1
      %p346 = por %p344, %p345
      %p347 = scmp.ne.s32.totalorder %s338, %s339
      %p348 = scmp.eq.s32.totalorder %s34, 0
      %p349 = por %p347, %p348
      %p350 = scmp.ne.s32.totalorder %s338, %s339
      %p351 = scmp.eq.s32.totalorder %s35, 1
      %p352 = por %p350, %p351
      %p354 = scmp.ne.s32.totalorder %s339, %s353
      %p355 = scmp.eq.s32.totalorder %s35, 0
      %p356 = por %p354, %p355
      %s358 = sadd.s32 %s357, 1
      %p361 = scmp.eq.s32.totalorder %s29, 1
      %p362 = scmp.ne.s32.totalorder %s357, %s359
      %p363 = scmp.eq.s32.totalorder %s29, 0
      %p364 = por %p362, %p363
      %p365 = scmp.ne.s32.totalorder %s357, %s359
      %p366 = scmp.eq.s32.totalorder %s34, 1
      %p367 = por %p365, %p366
      %p368 = scmp.ne.s32.totalorder %s359, %s360
      %p369 = scmp.eq.s32.totalorder %s34, 0
      %p370 = por %p368, %p369
      %p371 = scmp.ne.s32.totalorder %s359, %s360
      %p372 = scmp.eq.s32.totalorder %s35, 1
      %p373 = por %p371, %p372
      %p375 = scmp.ne.s32.totalorder %s360, %s374
      %p376 = scmp.eq.s32.totalorder %s35, 0
      %p377 = por %p375, %p376
      %s379 = sadd.s32 %s378, 1
      %p382 = scmp.eq.s32.totalorder %s29, 1
      %p383 = scmp.ne.s32.totalorder %s378, %s380
      %p384 = scmp.eq.s32.totalorder %s29, 0
      %p385 = por %p383, %p384
      %p386 = scmp.ne.s32.totalorder %s378, %s380
      %p387 = scmp.eq.s32.totalorder %s34, 1
      %p388 = por %p386, %p387
      %p389 = scmp.ne.s32.totalorder %s380, %s381
      %p390 = scmp.eq.s32.totalorder %s34, 0
      %p391 = por %p389, %p390
      %p392 = scmp.ne.s32.totalorder %s380, %s381
      %p393 = scmp.eq.s32.totalorder %s35, 1
      %p394 = por %p392, %p393
      %p396 = scmp.ne.s32.totalorder %s381, %s395
      %p397 = scmp.eq.s32.totalorder %s35, 0
      %p398 = por %p396, %p397
      %s400 = sadd.s32 %s399, 1
      %p403 = scmp.eq.s32.totalorder %s29, 1
      %p404 = scmp.ne.s32.totalorder %s399, %s401
      %p405 = scmp.eq.s32.totalorder %s29, 0
      %p406 = por %p404, %p405
      %p407 = scmp.ne.s32.totalorder %s399, %s401
      %p408 = scmp.eq.s32.totalorder %s34, 1
      %p409 = por %p407, %p408
      %p410 = scmp.ne.s32.totalorder %s401, %s402
      %p411 = scmp.eq.s32.totalorder %s34, 0
      %p412 = por %p410, %p411
      %p413 = scmp.ne.s32.totalorder %s401, %s402
      %p414 = scmp.eq.s32.totalorder %s35, 1
      %p415 = por %p413, %p414
      %p417 = scmp.ne.s32.totalorder %s402, %s416
      %p418 = scmp.eq.s32.totalorder %s35, 0
      %p419 = por %p417, %p418
      %s421 = sadd.s32 %s420, 1
      %p424 = scmp.eq.s32.totalorder %s29, 1
      %p425 = scmp.ne.s32.totalorder %s420, %s422
      %p426 = scmp.eq.s32.totalorder %s29, 0
      %p427 = por %p425, %p426
      %p428 = scmp.ne.s32.totalorder %s420, %s422
      %p429 = scmp.eq.s32.totalorder %s34, 1
      %p430 = por %p428, %p429
      %p431 = scmp.ne.s32.totalorder %s422, %s423
      %p432 = scmp.eq.s32.totalorder %s34, 0
      %p433 = por %p431, %p432
      %p434 = scmp.ne.s32.totalorder %s422, %s423
      %p435 = scmp.eq.s32.totalorder %s35, 1
      %p436 = por %p434, %p435
      %p438 = scmp.ne.s32.totalorder %s423, %s437
      %p439 = scmp.eq.s32.totalorder %s35, 0
      %p440 = por %p438, %p439
      %s442 = sadd.s32 %s441, 1
      %p445 = scmp.eq.s32.totalorder %s29, 1
      %p446 = scmp.ne.s32.totalorder %s441, %s443
      %p447 = scmp.eq.s32.totalorder %s29, 0
      %p448 = por %p446, %p447
      %p449 = scmp.ne.s32.totalorder %s441, %s443
      %p450 = scmp.eq.s32.totalorder %s34, 1
      %p451 = por %p449, %p450
      %p452 = scmp.ne.s32.totalorder %s443, %s444
      %p453 = scmp.eq.s32.totalorder %s34, 0
      %p454 = por %p452, %p453
      %p455 = scmp.ne.s32.totalorder %s443, %s444
      %p456 = scmp.eq.s32.totalorder %s35, 1
      %p457 = por %p455, %p456
      %p459 = scmp.ne.s32.totalorder %s444, %s458
      %p460 = scmp.eq.s32.totalorder %s35, 0
      %p461 = por %p459, %p460
      %s462 = ssub.s32 %s29, %s36
      %p463 = scmp.eq.s32.totalorder %s462, 0
      %s465 = sadd.s32 %s464, 1
      %s466 = scalar_select %p463, %s464, %s465
      %p469 = pneg %p463
      %p470 = scmp.eq.s32.totalorder %s29, 1
      %p471 = por %p469, %p470
      %p472 = scmp.ne.s32.totalorder %s464, %s467
      %p473 = scmp.eq.s32.totalorder %s29, 0
      %p474 = por %p472, %p473
      %p475 = scmp.ne.s32.totalorder %s464, %s467
      %p476 = scmp.eq.s32.totalorder %s34, 1
      %p477 = por %p475, %p476
      %p478 = scmp.ne.s32.totalorder %s467, %s468
      %p479 = scmp.eq.s32.totalorder %s34, 0
      %p480 = por %p478, %p479
      %p481 = scmp.ne.s32.totalorder %s467, %s468
      %p482 = scmp.eq.s32.totalorder %s35, 1
      %p483 = por %p481, %p482
      %p485 = scmp.ne.s32.totalorder %s468, %s484
      %p486 = scmp.eq.s32.totalorder %s35, 0
      %p487 = por %p485, %p486
      %p488 = scmp.le.s32.totalorder 1, %s29
      %p489 = scmp.lt.s32.totalorder %s29, 3
      %p490 = pnand %p488, %p489
      %p491 = pneg %p490
      // Predicated region
      $region9: #{tpu_custom_call.1} parent=5 // pred_check
        _
      $region10: #{tpu_custom_call.1} parent=5 // pred_check_branch
        %493 = sbr.rel (%p490) target = $region12
      $region11: #{tpu_custom_call.1} parent=5 // pred_region
        %s494 = ssub.s32 %s29, 1
        // Predicated region
        $region13: #{tpu_custom_call.1} parent=11 // pred_check
          %p495 = pneg %p76
        $region14: #{tpu_custom_call.1} parent=11 // pred_check_branch
          %497 = sbr.rel (%p495) target = $region16
        $region15: #{tpu_custom_call.1} parent=11 // pred_region
          _
        $region16: #{tpu_custom_call.1} parent=11 // pred_fallthru
          _
        // Predicated region
        $region17: #{tpu_custom_call.1} parent=11 // pred_check
          %p498 = pneg %p97
        $region18: #{tpu_custom_call.1} parent=11 // pred_check_branch
          %500 = sbr.rel (%p498) target = $region20
        $region19: #{tpu_custom_call.1} parent=11 // pred_region
          _
        $region20: #{tpu_custom_call.1} parent=11 // pred_fallthru
          _
        // Predicated region
        $region21: #{tpu_custom_call.1} parent=11 // pred_check
          %p501 = pneg %p118
        $region22: #{tpu_custom_call.1} parent=11 // pred_check_branch
          %503 = sbr.rel (%p501) target = $region24
        $region23: #{tpu_custom_call.1} parent=11 // pred_region
          _
        $region24: #{tpu_custom_call.1} parent=11 // pred_fallthru
          _
        // Predicated region
        $region25: #{tpu_custom_call.1} parent=11 // pred_check
          %p504 = pneg %p139
        $region26: #{tpu_custom_call.1} parent=11 // pred_check_branch
          %506 = sbr.rel (%p504) target = $region28
        $region27: #{tpu_custom_call.1} parent=11 // pred_region
          _
        $region28: #{tpu_custom_call.1} parent=11 // pred_fallthru
          _
        // Predicated region
        $region29: #{tpu_custom_call.1} parent=11 // pred_check
          %p507 = pneg %p160
        $region30: #{tpu_custom_call.1} parent=11 // pred_check_branch
          %509 = sbr.rel (%p507) target = $region32
        $region31: #{tpu_custom_call.1} parent=11 // pred_region
          _
        $region32: #{tpu_custom_call.1} parent=11 // pred_fallthru
          _
        // Predicated region
        $region33: #{tpu_custom_call.1} parent=11 // pred_check
          %p510 = pneg %p181
        $region34: #{tpu_custom_call.1} parent=11 // pred_check_branch
          %512 = sbr.rel (%p510) target = $region36
        $region35: #{tpu_custom_call.1} parent=11 // pred_region
          _
        $region36: #{tpu_custom_call.1} parent=11 // pred_fallthru
          _
        // Predicated region
        $region37: #{tpu_custom_call.1} parent=11 // pred_check
          %p513 = pneg %p202
        $region38: #{tpu_custom_call.1} parent=11 // pred_check_branch
          %515 = sbr.rel (%p513) target = $region40
        $region39: #{tpu_custom_call.1} parent=11 // pred_region
          _
        $region40: #{tpu_custom_call.1} parent=11 // pred_fallthru
          _
        // Predicated region
        $region41: #{tpu_custom_call.1} parent=11 // pred_check
          %p516 = pneg %p223
        $region42: #{tpu_custom_call.1} parent=11 // pred_check_branch
          %518 = sbr.rel (%p516) target = $region44
        $region43: #{tpu_custom_call.1} parent=11 // pred_region
          _
        $region44: #{tpu_custom_call.1} parent=11 // pred_fallthru
          _
        // Predicated region
        $region45: #{tpu_custom_call.1} parent=11 // pred_check
          %p519 = pneg %p244
        $region46: #{tpu_custom_call.1} parent=11 // pred_check_branch
          %521 = sbr.rel (%p519) target = $region48
        $region47: #{tpu_custom_call.1} parent=11 // pred_region
          _
        $region48: #{tpu_custom_call.1} parent=11 // pred_fallthru
          _
        // Predicated region
        $region49: #{tpu_custom_call.1} parent=11 // pred_check
          %p522 = pneg %p265
        $region50: #{tpu_custom_call.1} parent=11 // pred_check_branch
          %524 = sbr.rel (%p522) target = $region52
        $region51: #{tpu_custom_call.1} parent=11 // pred_region
          _
        $region52: #{tpu_custom_call.1} parent=11 // pred_fallthru
          _
        // Predicated region
        $region53: #{tpu_custom_call.1} parent=11 // pred_check
          %p525 = pneg %p286
        $region54: #{tpu_custom_call.1} parent=11 // pred_check_branch
          %527 = sbr.rel (%p525) target = $region56
        $region55: #{tpu_custom_call.1} parent=11 // pred_region
          _
        $region56: #{tpu_custom_call.1} parent=11 // pred_fallthru
          _
        // Predicated region
        $region57: #{tpu_custom_call.1} parent=11 // pred_check
          %p528 = pneg %p307
        $region58: #{tpu_custom_call.1} parent=11 // pred_check_branch
          %530 = sbr.rel (%p528) target = $region60
        $region59: #{tpu_custom_call.1} parent=11 // pred_region
          _
        $region60: #{tpu_custom_call.1} parent=11 // pred_fallthru
          _
        // Predicated region
        $region61: #{tpu_custom_call.1} parent=11 // pred_check
          %p531 = pneg %p328
        $region62: #{tpu_custom_call.1} parent=11 // pred_check_branch
          %533 = sbr.rel (%p531) target = $region64
        $region63: #{tpu_custom_call.1} parent=11 // pred_region
          _
        $region64: #{tpu_custom_call.1} parent=11 // pred_fallthru
          _
        // Predicated region
        $region65: #{tpu_custom_call.1} parent=11 // pred_check
          %p534 = pneg %p349
        $region66: #{tpu_custom_call.1} parent=11 // pred_check_branch
          %536 = sbr.rel (%p534) target = $region68
        $region67: #{tpu_custom_call.1} parent=11 // pred_region
          _
        $region68: #{tpu_custom_call.1} parent=11 // pred_fallthru
          _
        // Predicated region
        $region69: #{tpu_custom_call.1} parent=11 // pred_check
          %p537 = pneg %p370
        $region70: #{tpu_custom_call.1} parent=11 // pred_check_branch
          %539 = sbr.rel (%p537) target = $region72
        $region71: #{tpu_custom_call.1} parent=11 // pred_region
          _
        $region72: #{tpu_custom_call.1} parent=11 // pred_fallthru
          _
        // Predicated region
        $region73: #{tpu_custom_call.1} parent=11 // pred_check
          %p540 = pneg %p391
        $region74: #{tpu_custom_call.1} parent=11 // pred_check_branch
          %542 = sbr.rel (%p540) target = $region76
        $region75: #{tpu_custom_call.1} parent=11 // pred_region
          _
        $region76: #{tpu_custom_call.1} parent=11 // pred_fallthru
          _
        // Predicated region
        $region77: #{tpu_custom_call.1} parent=11 // pred_check
          %p543 = pneg %p412
        $region78: #{tpu_custom_call.1} parent=11 // pred_check_branch
          %545 = sbr.rel (%p543) target = $region80
        $region79: #{tpu_custom_call.1} parent=11 // pred_region
          _
        $region80: #{tpu_custom_call.1} parent=11 // pred_fallthru
          _
        // Predicated region
        $region81: #{tpu_custom_call.1} parent=11 // pred_check
          %p546 = pneg %p433
        $region82: #{tpu_custom_call.1} parent=11 // pred_check_branch
          %548 = sbr.rel (%p546) target = $region84
        $region83: #{tpu_custom_call.1} parent=11 // pred_region
          _
        $region84: #{tpu_custom_call.1} parent=11 // pred_fallthru
          _
        // Predicated region
        $region85: #{tpu_custom_call.1} parent=11 // pred_check
          %p549 = pneg %p454
        $region86: #{tpu_custom_call.1} parent=11 // pred_check_branch
          %551 = sbr.rel (%p549) target = $region88
        $region87: #{tpu_custom_call.1} parent=11 // pred_region
          _
        $region88: #{tpu_custom_call.1} parent=11 // pred_fallthru
          _
      $region12: #{tpu_custom_call.1} parent=5 // pred_fallthru
        _
      %p552 = scmp.lt.s32.totalorder %s29, 2
      // Predicated region
      $region89: #{tpu_custom_call.1} parent=5 // pred_check
        %p553 = pneg %p552
      $region90: #{tpu_custom_call.1} parent=5 // pred_check_branch
        %555 = sbr.rel (%p553) target = $region92
      $region91: #{tpu_custom_call.1} parent=5 // pred_region
        // Predicated region
        $region93: #{tpu_custom_call.1} parent=91 // pred_check
          %p556 = pneg %p49
        $region94: #{tpu_custom_call.1} parent=91 // pred_check_branch
          %558 = sbr.rel (%p556) target = $region96
        $region95: #{tpu_custom_call.1} parent=91 // pred_region
          %p559 = scmp.lt.s32.totalorder %s29, 1
          %s560 = scalar_select %p559, %s29, 1
          %s561 = smul.addr %s560, 10
          %s562 = smul.addr %s561, 4
          %s563 = scalar_lea.vmem %s0, %s562
        $region96: #{tpu_custom_call.1} parent=91 // pred_fallthru
          _
      $region92: #{tpu_custom_call.1} parent=5 // pred_fallthru
        _
      %p564 = scmp.le.s32.totalorder 1, %s29
      %p565 = scmp.lt.s32.totalorder %s29, 3
      %p566 = pnand %p564, %p565
      %p567 = pneg %p566
      // Predicated region
      $region97: #{tpu_custom_call.1} parent=5 // pred_check
        _
      $region98: #{tpu_custom_call.1} parent=5 // pred_check_branch
        %569 = sbr.rel (%p566) target = $region100
      $region99: #{tpu_custom_call.1} parent=5 // pred_region
        %s570 = ssub.s32 %s29, 1
        %p571 = scmp.lt.s32.totalorder %s34, 1
        %s572 = scalar_select %p571, %s34, 1
        %s573 = smul.addr %s572, 10
        %s574 = smul.addr %s573, 4
        %s575 = scalar_lea.vmem %s0, %s574
        %p576 = pneg %p55
        %p577 = pneg %p52
        %p578 = pneg %p76
        %p579 = pneg %p73
        %p580 = pneg %p97
        %p581 = pneg %p94
        %p582 = pneg %p118
        %p583 = pneg %p115
        %p584 = pneg %p139
        %p585 = pneg %p136
        %p586 = pneg %p160
        %p587 = pneg %p157
        %p588 = pneg %p181
        %p589 = pneg %p178
        %p590 = pneg %p202
        %p591 = pneg %p199
        %p592 = pneg %p223
        %p593 = pneg %p220
        %p594 = pneg %p244
        %p595 = pneg %p241
        %p596 = pneg %p265
        %p597 = pneg %p262
        %p598 = pneg %p286
        %p599 = pneg %p283
        %p600 = pneg %p307
        %p601 = pneg %p304
        %p602 = pneg %p328
        %p603 = pneg %p325
        %p604 = pneg %p349
        %p605 = pneg %p346
        %p606 = pneg %p370
        %p607 = pneg %p367
        %p608 = pneg %p391
        %p609 = pneg %p388
        %p610 = pneg %p412
        %p611 = pneg %p409
        %p612 = pneg %p433
        %p613 = pneg %p430
        %p614 = pneg %p454
        %p615 = pneg %p451
        %p616 = pneg %p480
        %p617 = pneg %p477
        %s618 = sand.u32 %s467, 1
        %s619 = scalar_lea.sflag [#allocation3], %s618
        %s620 = sand.u32 %s467, 1
        %s621 = smul.addr %s620, 16
        %s622 = scalar_lea.vmem [#allocation2], %s621
        %p623 = scmp.lt.s32.totalorder %s34, 1
        %s624 = scalar_select %p623, %s34, 1
        %s625 = smul.addr %s624, 10
        %s626 = smul.addr %s625, 4
        %s627 = scalar_lea.vmem %s0, %s626
        %v629 = vld [vmem:[%s19] ss:$2 sm:$0x3]
        %s630 = scalar_lea.vmem %s19, 1
        %v631 = vld [vmem:[%s630] ss:$2 sm:$0x3]
        %v632 = vld [vmem:[%s1] sm:$0xf]
        %v633 = vld [vmem:[%s627] sm:$0xff]
        %v634 = vld [vmem:[%s627 + $0x8] sm:$0xff]
        %v635 = vld [vmem:[%s627 + $0x10] sm:$0xff]
        %v636 = vld [vmem:[%s627 + $0x18] sm:$0xff]
        %v637 = vld [vmem:[%s627 + $0x20] sm:$0x33]
        %v643 = vunpack.c.l.b16 %v633
        %v644 = vunpack.c.h.b16 %v633
        %v645 = vunpack.c.l.b16 %v634
        %v646 = vunpack.c.h.b16 %v634
        %v647 = vunpack.c.l.b16 %v635
        %v648 = vunpack.c.h.b16 %v635
        %v649 = vunpack.c.l.b16 %v636
        %v650 = vunpack.c.h.b16 %v636
        %v651 = vunpack.c.l.b16 %v637
        %v652 = vunpack.c.h.b16 %v637
        %v653 = vpack.c.b16 %v645, %v643
        %v654 = vpack.c.b16 %v646, %v644
        %v655 = vpack.c.b16 %v649, %v647
        %v656 = vpack.c.b16 %v650, %v648
        %v657 = vpack.c.b16 %v651, %v651
        %v658 = vpack.c.b16 %v652, %v652
        %vm663 = vcmask 293888
        %v665 = vsel %vm663, %v632, 0
        %vm667 = vcmask 1041408
        %v669 = vsel %vm667, %v657, 0
        %v672 = vsel %vm667, %v658, 0
        %674 = vmatprep.subr.bf16.mxu0 %v654
        %675 = vmatpush1.bf16.msra.mxu0 %v653
        %676 = vmatprep.subr.bf16.mxu0 %v656
        %677 = vmatpush1.bf16.msra.mxu0 %v655
        %678 = vmatprep.subr.bf16.mxu0 %v672
        %679 = vmatpush1.bf16.msra.mxu0 %v669
        %680 = vmatprep.subr.bf16.mxu0 0
        %681 = vmatpush1.bf16.msra.mxu0 0
        %682 = vmatprep.subr.bf16.mxu0 0
        %683 = vmatpush1.bf16.msra.mxu0 0
        %684 = vmatprep.subr.bf16.mxu0 0
        %685 = vmatpush1.bf16.msra.mxu0 0
        %686 = vmatprep.subr.bf16.mxu0 0
        %687 = vmatpush1.bf16.msra.mxu0 0
        %688 = vmatprep.subr.bf16.mxu0 0
        %689 = vmatpush1.bf16.msra.mxu0 0
        %690 = vmatprep.subr.bf16.mxu0 0
        %691 = vmatpush1.bf16.msra.mxu0 0
        %692 = vmatprep.subr.bf16.mxu0 0
        %693 = vmatpush1.bf16.msra.mxu0 0
        %694 = vmatprep.subr.bf16.mxu0 0
        %695 = vmatpush1.bf16.msra.mxu0 0
        %696 = vmatprep.subr.bf16.mxu0 0
        %697 = vmatpush1.bf16.msra.mxu0 0
        %698 = vmatprep.subr.bf16.mxu0 0
        %699 = vmatpush1.bf16.msra.mxu0 0
        %700 = vmatprep.subr.bf16.mxu0 0
        %701 = vmatpush1.bf16.msra.mxu0 0
        %702 = vmatprep.subr.bf16.mxu0 0
        %703 = vmatpush1.bf16.msra.mxu0 0
        %704 = vmatprep.subr.bf16.mxu0 0
        %705 = vmatpush1.bf16.msra.mxu0 0
        %706 = vmatprep.mubr.bf16.mxu0 0
        %707 = vmatmul.mubr.bf16.gmra.mrb[0].mxu0 %v665
        %v708 = vpop.f32.mrb[0].mxu0
        %v709 = vadd.f32 0.0, %v708
        %v710 = vpop.f32.mrb[0].mxu0
        %v711 = vadd.f32 0.0, %v710
        %v712 = vpop.f32.mrb[0].mxu0
        %v713 = vpop.f32.mrb[0].mxu0
        %714 = vdwg.mxu0
        %v715 = vld [vmem:[%s2] sm:$0xff]
        %v716 = vld [vmem:[%s3] sm:$0xff]
        %718 = vset.pattern.permute.xlu0 0
        %719 = vperm.xlu0 %718, %v715
        %v720 = vpop.permute.xlu0 %719
        %v722 = vmul.f32 %v709, %v720
        %v723 = vmul.f32 %v711, %v720
        %725 = vset.pattern.permute.xlu0 0
        %726 = vperm.xlu0 %725, %v716
        %v727 = vpop.permute.xlu0 %726
        %v729 = vadd.f32 %v722, %v727
        %v730 = vadd.f32 %v723, %v727
        %v731 = vmin.f32 %v729, 20.0
        %v732 = vmin.f32 %v730, 20.0
        %v733 = vmul.f32 %v731, 1.442695
        %v734 = vpow.pop %v733
        %v735 = vmul.f32 %v732, 1.442695
        %v736 = vpow.pop %v735
        %v737 = vadd.f32 %v734, 2.0
        %v738 = vadd.f32 %v736, 2.0
        %v739 = vmul.f32 %v734, %v737
        %v740 = vmul.f32 %v736, %v738
        %v741 = vadd.f32 %v739, 2.0
        %v742 = vadd.f32 %v740, 2.0
        %v743 = vrcp.pop %v741
        %v744 = vrcp.pop %v742
        %v745 = vmul.f32 %v739, %v743
        %v746 = vmul.f32 %v740, %v744
        %v747 = vmul.f32 %v729, %v745
        %v748 = vmul.f32 %v730, %v746
        %v749 = vld [vmem:[%s4] sm:$0x3]
        %v750 = vpack.c.bf16 %v747, %v747
        %v751 = vpack.c.bf16 %v748, %v748
        %vm752 = vcmask 64512
        %v754 = vsel %vm752, %v749, 0
        %vm756 = vcmask 1043456
        %v758 = vsel %vm756, %v750, 0
        %v761 = vsel %vm756, %v751, 0
        %763 = vmatprep.subr.bf16.mxu0 %v761
        %764 = vmatpush1.bf16.msra.mxu0 %v758
        %765 = vmatprep.subr.bf16.mxu0 0
        %766 = vmatpush1.bf16.msra.mxu0 0
        %767 = vmatprep.subr.bf16.mxu0 0
        %768 = vmatpush1.bf16.msra.mxu0 0
        %769 = vmatprep.subr.bf16.mxu0 0
        %770 = vmatpush1.bf16.msra.mxu0 0
        %771 = vmatprep.subr.bf16.mxu0 0
        %772 = vmatpush1.bf16.msra.mxu0 0
        %773 = vmatprep.subr.bf16.mxu0 0
        %774 = vmatpush1.bf16.msra.mxu0 0
        %775 = vmatprep.subr.bf16.mxu0 0
        %776 = vmatpush1.bf16.msra.mxu0 0
        %777 = vmatprep.subr.bf16.mxu0 0
        %778 = vmatpush1.bf16.msra.mxu0 0
        %779 = vmatprep.subr.bf16.mxu0 0
        %780 = vmatpush1.bf16.msra.mxu0 0
        %781 = vmatprep.subr.bf16.mxu0 0
        %782 = vmatpush1.bf16.msra.mxu0 0
        %783 = vmatprep.subr.bf16.mxu0 0
        %784 = vmatpush1.bf16.msra.mxu0 0
        %785 = vmatprep.subr.bf16.mxu0 0
        %786 = vmatpush1.bf16.msra.mxu0 0
        %787 = vmatprep.subr.bf16.mxu0 0
        %788 = vmatpush1.bf16.msra.mxu0 0
        %789 = vmatprep.subr.bf16.mxu0 0
        %790 = vmatpush1.bf16.msra.mxu0 0
        %791 = vmatprep.subr.bf16.mxu0 0
        %792 = vmatpush1.bf16.msra.mxu0 0
        %793 = vmatprep.subr.bf16.mxu0 0
        %794 = vmatpush1.bf16.msra.mxu0 0
        %795 = vmatprep.mubr.bf16.mxu0 0
        %796 = vmatmul.mubr.bf16.gmra.mrb[0].mxu0 %v754
        %v797 = vpop.f32.mrb[0].mxu0
        %v798 = vadd.f32 0.0, %v797
        %v799 = vpop.f32.mrb[0].mxu0
        %v800 = vadd.f32 0.0, %v799
        %v801 = vpop.f32.mrb[0].mxu0
        %v802 = vpop.f32.mrb[0].mxu0
        %803 = vdwg.mxu0
        %v804 = vld [vmem:[%s5] sm:$0xf]
        %v805 = vld [vmem:[%s6] sm:$0xf]
        %807 = vset.pattern.permute.xlu0 0
        %808 = vperm.xlu0 %807, %v804
        %v809 = vpop.permute.xlu0 %808
        %v811 = vmul.f32 %v798, %v809
        %v812 = vmul.f32 %v800, %v809
        %814 = vset.pattern.permute.xlu0 0
        %815 = vperm.xlu0 %814, %v805
        %v816 = vpop.permute.xlu0 %815
        %v818 = vadd.f32 %v811, %v816
        %v819 = vadd.f32 %v812, %v816
        %v820 = vmin.f32 %v818, 20.0
        %v821 = vmin.f32 %v819, 20.0
        %v822 = vmul.f32 %v820, 1.442695
        %v823 = vpow.pop %v822
        %v824 = vmul.f32 %v821, 1.442695
        %v825 = vpow.pop %v824
        %v826 = vadd.f32 %v823, 2.0
        %v827 = vadd.f32 %v825, 2.0
        %v828 = vmul.f32 %v823, %v826
        %v829 = vmul.f32 %v825, %v827
        %v830 = vadd.f32 %v828, 2.0
        %v831 = vadd.f32 %v829, 2.0
        %v832 = vrcp.pop %v830
        %v833 = vrcp.pop %v831
        %v834 = vmul.f32 %v828, %v832
        %v835 = vmul.f32 %v829, %v833
        %v836 = vmul.f32 %v818, %v834
        %v837 = vmul.f32 %v819, %v835
        %v838 = vld [vmem:[%s7] sm:$0x3]
        %v840 = vsel %vm752, %v838, 0
        %842 = vmatprep.subr.bf16.mxu0 %v761
        %843 = vmatpush1.bf16.msra.mxu0 %v758
        %844 = vmatprep.subr.bf16.mxu0 0
        %845 = vmatpush1.bf16.msra.mxu0 0
        %846 = vmatprep.subr.bf16.mxu0 0
        %847 = vmatpush1.bf16.msra.mxu0 0
        %848 = vmatprep.subr.bf16.mxu0 0
        %849 = vmatpush1.bf16.msra.mxu0 0
        %850 = vmatprep.subr.bf16.mxu0 0
        %851 = vmatpush1.bf16.msra.mxu0 0
        %852 = vmatprep.subr.bf16.mxu0 0
        %853 = vmatpush1.bf16.msra.mxu0 0
        %854 = vmatprep.subr.bf16.mxu0 0
        %855 = vmatpush1.bf16.msra.mxu0 0
        %856 = vmatprep.subr.bf16.mxu0 0
        %857 = vmatpush1.bf16.msra.mxu0 0
        %858 = vmatprep.subr.bf16.mxu0 0
        %859 = vmatpush1.bf16.msra.mxu0 0
        %860 = vmatprep.subr.bf16.mxu0 0
        %861 = vmatpush1.bf16.msra.mxu0 0
        %862 = vmatprep.subr.bf16.mxu0 0
        %863 = vmatpush1.bf16.msra.mxu0 0
        %864 = vmatprep.subr.bf16.mxu0 0
        %865 = vmatpush1.bf16.msra.mxu0 0
        %866 = vmatprep.subr.bf16.mxu0 0
        %867 = vmatpush1.bf16.msra.mxu0 0
        %868 = vmatprep.subr.bf16.mxu0 0
        %869 = vmatpush1.bf16.msra.mxu0 0
        %870 = vmatprep.subr.bf16.mxu0 0
        %871 = vmatpush1.bf16.msra.mxu0 0
        %872 = vmatprep.subr.bf16.mxu0 0
        %873 = vmatpush1.bf16.msra.mxu0 0
        %874 = vmatprep.mubr.bf16.mxu0 0
        %875 = vmatmul.mubr.bf16.gmra.mrb[0].mxu0 %v840
        %v876 = vpop.f32.mrb[0].mxu0
        %v877 = vadd.f32 0.0, %v876
        %v878 = vpop.f32.mrb[0].mxu0
        %v879 = vadd.f32 0.0, %v878
        %v880 = vpop.f32.mrb[0].mxu0
        %v881 = vpop.f32.mrb[0].mxu0
        %882 = vdwg.mxu0
        %v883 = vld [vmem:[%s8] sm:$0xf]
        %v884 = vld [vmem:[%s9] sm:$0xf]
        %886 = vset.pattern.permute.xlu0 0
        %887 = vperm.xlu0 %886, %v883
        %v888 = vpop.permute.xlu0 %887
        %v890 = vmul.f32 %v877, %v888
        %v891 = vmul.f32 %v879, %v888
        %893 = vset.pattern.permute.xlu0 0
        %894 = vperm.xlu0 %893, %v884
        %v895 = vpop.permute.xlu0 %894
        %v897 = vadd.f32 %v890, %v895
        %v898 = vadd.f32 %v891, %v895
        %v899 = vmin.f32 %v897, 20.0
        %v900 = vmin.f32 %v898, 20.0
        %v901 = vmul.f32 %v899, 1.442695
        %v902 = vpow.pop %v901
        %v903 = vmul.f32 %v900, 1.442695
        %v904 = vpow.pop %v903
        %v905 = vadd.f32 %v902, 2.0
        %v906 = vadd.f32 %v904, 2.0
        %v907 = vmul.f32 %v902, %v905
        %v908 = vmul.f32 %v904, %v906
        %v909 = vadd.f32 %v907, 2.0
        %v910 = vadd.f32 %v908, 2.0
        %v911 = vrcp.pop %v909
        %v912 = vrcp.pop %v910
        %v913 = vmul.f32 %v907, %v911
        %v914 = vmul.f32 %v908, %v912
        %v915 = vmul.f32 %v897, %v913
        %v916 = vmul.f32 %v898, %v914
        %v917 = vld [vmem:[%s10] sm:$0x1]
        %v918 = vpack.c.bf16 %v915, %v915
        %v919 = vpack.c.bf16 %v916, %v916
        %vm920 = vcmask 31744
        %v922 = vsel %vm920, %v917, 0
        %v925 = vsel %vm667, %v918, 0
        %v928 = vsel %vm667, %v919, 0
        %930 = vmatprep.subr.bf16.mxu0 %v928
        %931 = vmatpush1.bf16.msra.mxu0 %v925
        %932 = vmatprep.subr.bf16.mxu0 0
        %933 = vmatpush1.bf16.msra.mxu0 0
        %934 = vmatprep.subr.bf16.mxu0 0
        %935 = vmatpush1.bf16.msra.mxu0 0
        %936 = vmatprep.subr.bf16.mxu0 0
        %937 = vmatpush1.bf16.msra.mxu0 0
        %938 = vmatprep.subr.bf16.mxu0 0
        %939 = vmatpush1.bf16.msra.mxu0 0
        %940 = vmatprep.subr.bf16.mxu0 0
        %941 = vmatpush1.bf16.msra.mxu0 0
        %942 = vmatprep.subr.bf16.mxu0 0
        %943 = vmatpush1.bf16.msra.mxu0 0
        %944 = vmatprep.subr.bf16.mxu0 0
        %945 = vmatpush1.bf16.msra.mxu0 0
        %946 = vmatprep.subr.bf16.mxu0 0
        %947 = vmatpush1.bf16.msra.mxu0 0
        %948 = vmatprep.subr.bf16.mxu0 0
        %949 = vmatpush1.bf16.msra.mxu0 0
        %950 = vmatprep.subr.bf16.mxu0 0
        %951 = vmatpush1.bf16.msra.mxu0 0
        %952 = vmatprep.subr.bf16.mxu0 0
        %953 = vmatpush1.bf16.msra.mxu0 0
        %954 = vmatprep.subr.bf16.mxu0 0
        %955 = vmatpush1.bf16.msra.mxu0 0
        %956 = vmatprep.subr.bf16.mxu0 0
        %957 = vmatpush1.bf16.msra.mxu0 0
        %958 = vmatprep.subr.bf16.mxu0 0
        %959 = vmatpush1.bf16.msra.mxu0 0
        %960 = vmatprep.subr.bf16.mxu0 0
        %961 = vmatpush1.bf16.msra.mxu0 0
        %962 = vmatprep.mubr.bf16.mxu0 0
        %963 = vmatmul.mubr.bf16.gmra.mrb[0].mxu0 %v922
        %v964 = vpop.f32.mrb[0].mxu0
        %v965 = vadd.f32 0.0, %v964
        %v966 = vpop.f32.mrb[0].mxu0
        %v967 = vadd.f32 0.0, %v966
        %v968 = vpop.f32.mrb[0].mxu0
        %v969 = vpop.f32.mrb[0].mxu0
        %970 = vdwg.mxu0
        %v971 = vld [vmem:[%s11] sm:$0x3]
        %v972 = vld [vmem:[%s12] sm:$0x3]
        %974 = vset.pattern.permute.xlu0 0
        %975 = vperm.xlu0 %974, %v971
        %v976 = vpop.permute.xlu0 %975
        %v978 = vmul.f32 %v965, %v976
        %v979 = vmul.f32 %v967, %v976
        %981 = vset.pattern.permute.xlu0 0
        %982 = vperm.xlu0 %981, %v972
        %v983 = vpop.permute.xlu0 %982
        %v985 = vadd.f32 %v978, %v983
        %v986 = vadd.f32 %v979, %v983
        %v987 = vmin.f32 %v985, 20.0
        %v988 = vmin.f32 %v986, 20.0
        %v989 = vmul.f32 %v987, 1.442695
        %v990 = vpow.pop %v989
        %v991 = vmul.f32 %v988, 1.442695
        %v992 = vpow.pop %v991
        %v993 = vadd.f32 %v990, 2.0
        %v994 = vadd.f32 %v992, 2.0
        %v995 = vmul.f32 %v990, %v993
        %v996 = vmul.f32 %v992, %v994
        %v997 = vadd.f32 %v995, 2.0
        %v998 = vadd.f32 %v996, 2.0
        %v999 = vrcp.pop %v997
        %v1000 = vrcp.pop %v998
        %v1001 = vmul.f32 %v995, %v999
        %v1002 = vmul.f32 %v996, %v1000
        %v1003 = vmul.f32 %v985, %v1001
        %v1004 = vmul.f32 %v986, %v1002
        %v1005 = vld [vmem:[%s13] sm:$0x3]
        %1008 = vrot.lane.b32.xlu0 %v1003, 17
        %v1009 = vpop.permute.xlu0 %1008
        %1010 = vrot.lane.b32.xlu0 %v1004, 17
        %v1011 = vpop.permute.xlu0 %1010
        %vm1012 = vcmask 138240
        %v1013 = vsel %vm1012, %v1009, %v1011
        %v1016 = vsel %vm1012, 0.0, %v1009
        %v1018 = vlaneseq
        %v1019 = vshrl.u32 %v1018, 7
        %v1020 = vsub.s32 0, %v1019
        %v1021 = vrot.slane %v629, %v1020
        %v1022 = vlaneseq
        %v1023 = vshrl.u32 %v1022, 7
        %v1024 = vsub.s32 1, %v1023
        %v1025 = vrot.slane %v629, %v1024
        %v1028 = vmul.f32 %v1016, %v1021
        %v1029 = vmul.f32 %v1013, %v1025
        %1030 = vrot.lane.b32.xlu0 %v1003, 16
        %v1031 = vpop.permute.xlu0 %1030
        %1032 = vrot.lane.b32.xlu0 %v1004, 16
        %v1033 = vpop.permute.xlu0 %1032
        %vm1034 = vcmask 130048
        %v1035 = vsel %vm1034, %v1031, %v1033
        %v1037 = vsel %vm1034, 0.0, %v1031
        %1038 = vrot.lane.b32.xlu0 %v1003, 15
        %v1039 = vpop.permute.xlu0 %1038
        %1040 = vrot.lane.b32.xlu0 %v1004, 15
        %v1041 = vpop.permute.xlu0 %1040
        %vm1042 = vcmask 121856
        %v1043 = vsel %vm1042, %v1039, %v1041
        %v1046 = vsel %vm1042, 0.0, %v1039
        %v1048 = vlaneseq
        %v1049 = vshrl.u32 %v1048, 7
        %v1050 = vsub.s32 0, %v1049
        %v1051 = vrot.slane %v631, %v1050
        %v1052 = vlaneseq
        %v1053 = vshrl.u32 %v1052, 7
        %v1054 = vsub.s32 1, %v1053
        %v1055 = vrot.slane %v631, %v1054
        %v1058 = vmul.f32 %v1046, %v1051
        %v1059 = vmul.f32 %v1043, %v1055
        %1060 = vrot.lane.b32.xlu0 %v1003, 1
        %v1061 = vpop.permute.xlu0 %1060
        %1062 = vrot.lane.b32.xlu0 %v1004, 1
        %v1063 = vpop.permute.xlu0 %1062
        %vm1064 = vcmask 7168
        %v1065 = vsel %vm1064, %v1061, %v1063
        %v1068 = vsel %vm1064, 0.0, %v1061
        %v1069 = vmul.f32 %v1068, %v1021
        %v1070 = vmul.f32 %v1065, %v1025
        %1071 = vrot.lane.b32.xlu0 %v1003, 127
        %v1072 = vpop.permute.xlu0 %1071
        %1073 = vrot.lane.b32.xlu0 %v1004, 127
        %v1074 = vpop.permute.xlu0 %1073
        %vm1075 = vcmask 1039360
        %v1076 = vsel %vm1075, %v1072, %v1074
        %v1079 = vsel %vm1075, %v1074, 0.0
        %v1080 = vmul.f32 %v1076, %v1051
        %v1081 = vmul.f32 %v1079, %v1055
        %1082 = vrot.lane.b32.xlu0 %v1003, 113
        %v1083 = vpop.permute.xlu0 %1082
        %1084 = vrot.lane.b32.xlu0 %v1004, 113
        %v1085 = vpop.permute.xlu0 %1084
        %vm1086 = vcmask 924672
        %v1087 = vsel %vm1086, %v1083, %v1085
        %v1090 = vsel %vm1086, %v1085, 0.0
        %v1091 = vmul.f32 %v1087, %v1021
        %v1092 = vmul.f32 %v1090, %v1025
        %1093 = vrot.lane.b32.xlu0 %v1003, 112
        %v1094 = vpop.permute.xlu0 %1093
        %1095 = vrot.lane.b32.xlu0 %v1004, 112
        %v1096 = vpop.permute.xlu0 %1095
        %vm1097 = vcmask 916480
        %v1098 = vsel %vm1097, %v1094, %v1096
        %v1100 = vsel %vm1097, %v1096, 0.0
        %1101 = vrot.lane.b32.xlu0 %v1003, 111
        %v1102 = vpop.permute.xlu0 %1101
        %1103 = vrot.lane.b32.xlu0 %v1004, 111
        %v1104 = vpop.permute.xlu0 %1103
        %vm1105 = vcmask 908288
        %v1106 = vsel %vm1105, %v1102, %v1104
        %v1109 = vsel %vm1105, %v1104, 0.0
        %v1110 = vmul.f32 %v1106, %v1051
        %v1111 = vmul.f32 %v1109, %v1055
        %v1113 = vrot.slane %v1037, 6
        %v1114 = vrot.slane %v1035, 6
        %v1119 = vrot.slane %v1058, 4
        %v1120 = vrot.slane %v1059, 4
        %v1125 = vrot.slane %v1069, 2
        %v1126 = vrot.slane %v1070, 2
        %v1131 = vrot.slane %v1080, 6
        %v1132 = vrot.slane %v1081, 6
        %v1137 = vrot.slane %v1091, 4
        %v1138 = vrot.slane %v1092, 4
        %v1142 = vrot.slane %v1098, 2
        %v1143 = vrot.slane %v1100, 2
        %v1146 = vsel %vm667, %v1028, %v1113
        %v1147 = vsel %vm667, %v1029, %v1114
        %v1148 = vsel %vm756, %v1146, %v1119
        %v1149 = vsel %vm756, %v1147, %v1120
        %vm1150 = vcmask 1045504
        %v1151 = vsel %vm1150, %v1148, %v1125
        %v1152 = vsel %vm1150, %v1149, %v1126
        %v1153 = vsel %vm667, %v1003, %v1131
        %v1154 = vsel %vm667, %v1004, %v1132
        %v1155 = vsel %vm756, %v1153, %v1137
        %v1156 = vsel %vm756, %v1154, %v1138
        %v1157 = vsel %vm1150, %v1155, %v1142
        %v1158 = vsel %vm1150, %v1156, %v1143
        %v1159 = vpack.c.bf16 %v1157, %v1151
        %v1160 = vpack.c.bf16 %v1158, %v1152
        %v1161 = vpack.c.bf16 %v1110, %v1110
        %v1162 = vpack.c.bf16 %v1111, %v1111
        %vm1163 = vcmask 146432
        %v1165 = vsel %vm1163, %v1005, 0
        %vm1167 = vcmask 1040384
        %v1169 = vsel %vm1167, %v1161, 0
        %v1172 = vsel %vm1167, %v1162, 0
        %1174 = vmatprep.subr.bf16.mxu0 %v1160
        %1175 = vmatpush1.bf16.msra.mxu0 %v1159
        %1176 = vmatprep.subr.bf16.mxu0 %v1172
        %1177 = vmatpush1.bf16.msra.mxu0 %v1169
        %1178 = vmatprep.subr.bf16.mxu0 0
        %1179 = vmatpush1.bf16.msra.mxu0 0
        %1180 = vmatprep.subr.bf16.mxu0 0
        %1181 = vmatpush1.bf16.msra.mxu0 0
        %1182 = vmatprep.subr.bf16.mxu0 0
        %1183 = vmatpush1.bf16.msra.mxu0 0
        %1184 = vmatprep.subr.bf16.mxu0 0
        %1185 = vmatpush1.bf16.msra.mxu0 0
        %1186 = vmatprep.subr.bf16.mxu0 0
        %1187 = vmatpush1.bf16.msra.mxu0 0
        %1188 = vmatprep.subr.bf16.mxu0 0
        %1189 = vmatpush1.bf16.msra.mxu0 0
        %1190 = vmatprep.subr.bf16.mxu0 0
        %1191 = vmatpush1.bf16.msra.mxu0 0
        %1192 = vmatprep.subr.bf16.mxu0 0
        %1193 = vmatpush1.bf16.msra.mxu0 0
        %1194 = vmatprep.subr.bf16.mxu0 0
        %1195 = vmatpush1.bf16.msra.mxu0 0
        %1196 = vmatprep.subr.bf16.mxu0 0
        %1197 = vmatpush1.bf16.msra.mxu0 0
        %1198 = vmatprep.subr.bf16.mxu0 0
        %1199 = vmatpush1.bf16.msra.mxu0 0
        %1200 = vmatprep.subr.bf16.mxu0 0
        %1201 = vmatpush1.bf16.msra.mxu0 0
        %1202 = vmatprep.subr.bf16.mxu0 0
        %1203 = vmatpush1.bf16.msra.mxu0 0
        %1204 = vmatprep.subr.bf16.mxu0 0
        %1205 = vmatpush1.bf16.msra.mxu0 0
        %1206 = vmatprep.mubr.bf16.mxu0 0
        %1207 = vmatmul.mubr.bf16.gmra.mrb[0].mxu0 %v1165
        %v1208 = vpop.f32.mrb[0].mxu0
        %v1209 = vadd.f32 0.0, %v1208
        %v1210 = vpop.f32.mrb[0].mxu0
        %v1211 = vadd.f32 0.0, %v1210
        %v1212 = vpop.f32.mrb[0].mxu0
        %v1213 = vpop.f32.mrb[0].mxu0
        %1214 = vdwg.mxu0
        %v1215 = vld [vmem:[%s14] sm:$0xf]
        %v1216 = vld [vmem:[%s15] sm:$0xf]
        %1218 = vset.pattern.permute.xlu0 0
        %1219 = vperm.xlu0 %1218, %v1215
        %v1220 = vpop.permute.xlu0 %1219
        %v1222 = vmul.f32 %v1209, %v1220
        %v1223 = vmul.f32 %v1211, %v1220
        %1225 = vset.pattern.permute.xlu0 0
        %1226 = vperm.xlu0 %1225, %v1216
        %v1227 = vpop.permute.xlu0 %1226
        %v1229 = vadd.f32 %v1222, %v1227
        %v1230 = vadd.f32 %v1223, %v1227
        %v1231 = vmin.f32 %v1229, 20.0
        %v1232 = vmin.f32 %v1230, 20.0
        %v1233 = vmul.f32 %v1231, 1.442695
        %v1234 = vpow.pop %v1233
        %v1235 = vmul.f32 %v1232, 1.442695
        %v1236 = vpow.pop %v1235
        %v1237 = vadd.f32 %v1234, 2.0
        %v1238 = vadd.f32 %v1236, 2.0
        %v1239 = vmul.f32 %v1234, %v1237
        %v1240 = vmul.f32 %v1236, %v1238
        %v1241 = vadd.f32 %v1239, 2.0
        %v1242 = vadd.f32 %v1240, 2.0
        %v1243 = vrcp.pop %v1241
        %v1244 = vrcp.pop %v1242
        %v1245 = vmul.f32 %v1239, %v1243
        %v1246 = vmul.f32 %v1240, %v1244
        %v1247 = vmul.f32 %v1229, %v1245
        %v1248 = vmul.f32 %v1230, %v1246
        %v1249 = vadd.f32 %v915, %v1247
        %v1250 = vadd.f32 %v916, %v1248
        %s1251 = scalar_lea.vmem %s10, 1
        %v1252 = vld [vmem:[%s1251] sm:$0x1]
        %v1253 = vpack.c.bf16 %v1249, %v1249
        %v1254 = vpack.c.bf16 %v1250, %v1250
        %v1256 = vsel %vm920, %v1252, 0
        %v1259 = vsel %vm667, %v1253, 0
        %v1262 = vsel %vm667, %v1254, 0
        %1264 = vmatprep.subr.bf16.mxu0 %v1262
        %1265 = vmatpush1.bf16.msra.mxu0 %v1259
        %1266 = vmatprep.subr.bf16.mxu0 0
        %1267 = vmatpush1.bf16.msra.mxu0 0
        %1268 = vmatprep.subr.bf16.mxu0 0
        %1269 = vmatpush1.bf16.msra.mxu0 0
        %1270 = vmatprep.subr.bf16.mxu0 0
        %1271 = vmatpush1.bf16.msra.mxu0 0
        %1272 = vmatprep.subr.bf16.mxu0 0
        %1273 = vmatpush1.bf16.msra.mxu0 0
        %1274 = vmatprep.subr.bf16.mxu0 0
        %1275 = vmatpush1.bf16.msra.mxu0 0
        %1276 = vmatprep.subr.bf16.mxu0 0
        %1277 = vmatpush1.bf16.msra.mxu0 0
        %1278 = vmatprep.subr.bf16.mxu0 0
        %1279 = vmatpush1.bf16.msra.mxu0 0
        %1280 = vmatprep.subr.bf16.mxu0 0
        %1281 = vmatpush1.bf16.msra.mxu0 0
        %1282 = vmatprep.subr.bf16.mxu0 0
        %1283 = vmatpush1.bf16.msra.mxu0 0
        %1284 = vmatprep.subr.bf16.mxu0 0
        %1285 = vmatpush1.bf16.msra.mxu0 0
        %1286 = vmatprep.subr.bf16.mxu0 0
        %1287 = vmatpush1.bf16.msra.mxu0 0
        %1288 = vmatprep.subr.bf16.mxu0 0
        %1289 = vmatpush1.bf16.msra.mxu0 0
        %1290 = vmatprep.subr.bf16.mxu0 0
        %1291 = vmatpush1.bf16.msra.mxu0 0
        %1292 = vmatprep.subr.bf16.mxu0 0
        %1293 = vmatpush1.bf16.msra.mxu0 0
        %1294 = vmatprep.subr.bf16.mxu0 0
        %1295 = vmatpush1.bf16.msra.mxu0 0
        %1296 = vmatprep.mubr.bf16.mxu0 0
        %1297 = vmatmul.mubr.bf16.gmra.mrb[0].mxu0 %v1256
        %v1298 = vpop.f32.mrb[0].mxu0
        %v1299 = vadd.f32 0.0, %v1298
        %v1300 = vpop.f32.mrb[0].mxu0
        %v1301 = vadd.f32 0.0, %v1300
        %v1302 = vpop.f32.mrb[0].mxu0
        %v1303 = vpop.f32.mrb[0].mxu0
        %1304 = vdwg.mxu0
        %s1305 = scalar_lea.vmem %s11, 2
        %v1306 = vld [vmem:[%s1305] sm:$0x3]
        %s1307 = scalar_lea.vmem %s12, 2
        %v1308 = vld [vmem:[%s1307] sm:$0x3]
        %1310 = vset.pattern.permute.xlu0 0
        %1311 = vperm.xlu0 %1310, %v1306
        %v1312 = vpop.permute.xlu0 %1311
        %v1314 = vmul.f32 %v1299, %v1312
        %v1315 = vmul.f32 %v1301, %v1312
        %1317 = vset.pattern.permute.xlu0 0
        %1318 = vperm.xlu0 %1317, %v1308
        %v1319 = vpop.permute.xlu0 %1318
        %v1321 = vadd.f32 %v1314, %v1319
        %v1322 = vadd.f32 %v1315, %v1319
        %v1323 = vmin.f32 %v1321, 20.0
        %v1324 = vmin.f32 %v1322, 20.0
        %v1325 = vmul.f32 %v1323, 1.442695
        %v1326 = vpow.pop %v1325
        %v1327 = vmul.f32 %v1324, 1.442695
        %v1328 = vpow.pop %v1327
        %v1329 = vadd.f32 %v1326, 2.0
        %v1330 = vadd.f32 %v1328, 2.0
        %v1331 = vmul.f32 %v1326, %v1329
        %v1332 = vmul.f32 %v1328, %v1330
        %v1333 = vadd.f32 %v1331, 2.0
        %v1334 = vadd.f32 %v1332, 2.0
        %v1335 = vrcp.pop %v1333
        %v1336 = vrcp.pop %v1334
        %v1337 = vmul.f32 %v1331, %v1335
        %v1338 = vmul.f32 %v1332, %v1336
        %v1339 = vmul.f32 %v1321, %v1337
        %v1340 = vmul.f32 %v1322, %v1338
        %s1341 = scalar_lea.vmem %s13, 2
        %v1342 = vld [vmem:[%s1341] sm:$0x3]
        %1345 = vrot.lane.b32.xlu0 %v1339, 17
        %v1346 = vpop.permute.xlu0 %1345
        %1347 = vrot.lane.b32.xlu0 %v1340, 17
        %v1348 = vpop.permute.xlu0 %1347
        %v1349 = vsel %vm1012, %v1346, %v1348
        %v1352 = vsel %vm1012, 0.0, %v1346
        %v1353 = vmul.f32 %v1352, %v1021
        %v1354 = vmul.f32 %v1349, %v1025
        %1355 = vrot.lane.b32.xlu0 %v1339, 16
        %v1356 = vpop.permute.xlu0 %1355
        %1357 = vrot.lane.b32.xlu0 %v1340, 16
        %v1358 = vpop.permute.xlu0 %1357
        %v1359 = vsel %vm1034, %v1356, %v1358
        %v1361 = vsel %vm1034, 0.0, %v1356
        %1362 = vrot.lane.b32.xlu0 %v1339, 15
        %v1363 = vpop.permute.xlu0 %1362
        %1364 = vrot.lane.b32.xlu0 %v1340, 15
        %v1365 = vpop.permute.xlu0 %1364
        %v1366 = vsel %vm1042, %v1363, %v1365
        %v1369 = vsel %vm1042, 0.0, %v1363
        %v1370 = vmul.f32 %v1369, %v1051
        %v1371 = vmul.f32 %v1366, %v1055
        %1372 = vrot.lane.b32.xlu0 %v1339, 1
        %v1373 = vpop.permute.xlu0 %1372
        %1374 = vrot.lane.b32.xlu0 %v1340, 1
        %v1375 = vpop.permute.xlu0 %1374
        %v1376 = vsel %vm1064, %v1373, %v1375
        %v1379 = vsel %vm1064, 0.0, %v1373
        %v1380 = vmul.f32 %v1379, %v1021
        %v1381 = vmul.f32 %v1376, %v1025
        %1382 = vrot.lane.b32.xlu0 %v1339, 127
        %v1383 = vpop.permute.xlu0 %1382
        %1384 = vrot.lane.b32.xlu0 %v1340, 127
        %v1385 = vpop.permute.xlu0 %1384
        %v1386 = vsel %vm1075, %v1383, %v1385
        %v1389 = vsel %vm1075, %v1385, 0.0
        %v1390 = vmul.f32 %v1386, %v1051
        %v1391 = vmul.f32 %v1389, %v1055
        %1392 = vrot.lane.b32.xlu0 %v1339, 113
        %v1393 = vpop.permute.xlu0 %1392
        %1394 = vrot.lane.b32.xlu0 %v1340, 113
        %v1395 = vpop.permute.xlu0 %1394
        %v1396 = vsel %vm1086, %v1393, %v1395
        %v1399 = vsel %vm1086, %v1395, 0.0
        %v1400 = vmul.f32 %v1396, %v1021
        %v1401 = vmul.f32 %v1399, %v1025
        %1402 = vrot.lane.b32.xlu0 %v1339, 112
        %v1403 = vpop.permute.xlu0 %1402
        %1404 = vrot.lane.b32.xlu0 %v1340, 112
        %v1405 = vpop.permute.xlu0 %1404
        %v1406 = vsel %vm1097, %v1403, %v1405
        %v1408 = vsel %vm1097, %v1405, 0.0
        %1409 = vrot.lane.b32.xlu0 %v1339, 111
        %v1410 = vpop.permute.xlu0 %1409
        %1411 = vrot.lane.b32.xlu0 %v1340, 111
        %v1412 = vpop.permute.xlu0 %1411
        %v1413 = vsel %vm1105, %v1410, %v1412
        %v1416 = vsel %vm1105, %v1412, 0.0
        %v1417 = vmul.f32 %v1413, %v1051
        %v1418 = vmul.f32 %v1416, %v1055
        %v1420 = vrot.slane %v1361, 6
        %v1421 = vrot.slane %v1359, 6
        %v1426 = vrot.slane %v1370, 4
        %v1427 = vrot.slane %v1371, 4
        %v1432 = vrot.slane %v1380, 2
        %v1433 = vrot.slane %v1381, 2
        %v1438 = vrot.slane %v1390, 6
        %v1439 = vrot.slane %v1391, 6
        %v1444 = vrot.slane %v1400, 4
        %v1445 = vrot.slane %v1401, 4
        %v1449 = vrot.slane %v1406, 2
        %v1450 = vrot.slane %v1408, 2
        %v1453 = vsel %vm667, %v1353, %v1420
        %v1454 = vsel %vm667, %v1354, %v1421
        %v1455 = vsel %vm756, %v1453, %v1426
        %v1456 = vsel %vm756, %v1454, %v1427
        %v1457 = vsel %vm1150, %v1455, %v1432
        %v1458 = vsel %vm1150, %v1456, %v1433
        %v1459 = vsel %vm667, %v1339, %v1438
        %v1460 = vsel %vm667, %v1340, %v1439
        %v1461 = vsel %vm756, %v1459, %v1444
        %v1462 = vsel %vm756, %v1460, %v1445
        %v1463 = vsel %vm1150, %v1461, %v1449
        %v1464 = vsel %vm1150, %v1462, %v1450
        %v1465 = vpack.c.bf16 %v1463, %v1457
        %v1466 = vpack.c.bf16 %v1464, %v1458
        %v1467 = vpack.c.bf16 %v1417, %v1417
        %v1468 = vpack.c.bf16 %v1418, %v1418
        %v1470 = vsel %vm1163, %v1342, 0
        %v1473 = vsel %vm1167, %v1467, 0
        %v1476 = vsel %vm1167, %v1468, 0
        %1478 = vmatprep.subr.bf16.mxu0 %v1466
        %1479 = vmatpush1.bf16.msra.mxu0 %v1465
        %1480 = vmatprep.subr.bf16.mxu0 %v1476
        %1481 = vmatpush1.bf16.msra.mxu0 %v1473
        %1482 = vmatprep.subr.bf16.mxu0 0
        %1483 = vmatpush1.bf16.msra.mxu0 0
        %1484 = vmatprep.subr.bf16.mxu0 0
        %1485 = vmatpush1.bf16.msra.mxu0 0
        %1486 = vmatprep.subr.bf16.mxu0 0
        %1487 = vmatpush1.bf16.msra.mxu0 0
        %1488 = vmatprep.subr.bf16.mxu0 0
        %1489 = vmatpush1.bf16.msra.mxu0 0
        %1490 = vmatprep.subr.bf16.mxu0 0
        %1491 = vmatpush1.bf16.msra.mxu0 0
        %1492 = vmatprep.subr.bf16.mxu0 0
        %1493 = vmatpush1.bf16.msra.mxu0 0
        %1494 = vmatprep.subr.bf16.mxu0 0
        %1495 = vmatpush1.bf16.msra.mxu0 0
        %1496 = vmatprep.subr.bf16.mxu0 0
        %1497 = vmatpush1.bf16.msra.mxu0 0
        %1498 = vmatprep.subr.bf16.mxu0 0
        %1499 = vmatpush1.bf16.msra.mxu0 0
        %1500 = vmatprep.subr.bf16.mxu0 0
        %1501 = vmatpush1.bf16.msra.mxu0 0
        %1502 = vmatprep.subr.bf16.mxu0 0
        %1503 = vmatpush1.bf16.msra.mxu0 0
        %1504 = vmatprep.subr.bf16.mxu0 0
        %1505 = vmatpush1.bf16.msra.mxu0 0
        %1506 = vmatprep.subr.bf16.mxu0 0
        %1507 = vmatpush1.bf16.msra.mxu0 0
        %1508 = vmatprep.subr.bf16.mxu0 0
        %1509 = vmatpush1.bf16.msra.mxu0 0
        %1510 = vmatprep.mubr.bf16.mxu0 0
        %1511 = vmatmul.mubr.bf16.gmra.mrb[0].mxu0 %v1470
        %v1512 = vpop.f32.mrb[0].mxu0
        %v1513 = vadd.f32 0.0, %v1512
        %v1514 = vpop.f32.mrb[0].mxu0
        %v1515 = vadd.f32 0.0, %v1514
        %v1516 = vpop.f32.mrb[0].mxu0
        %v1517 = vpop.f32.mrb[0].mxu0
        %1518 = vdwg.mxu0
        %s1519 = scalar_lea.vmem %s14, 4
        %v1520 = vld [vmem:[%s1519] sm:$0xf]
        %s1521 = scalar_lea.vmem %s15, 4
        %v1522 = vld [vmem:[%s1521] sm:$0xf]
        %1524 = vset.pattern.permute.xlu0 0
        %1525 = vperm.xlu0 %1524, %v1520
        %v1526 = vpop.permute.xlu0 %1525
        %v1528 = vmul.f32 %v1513, %v1526
        %v1529 = vmul.f32 %v1515, %v1526
        %1531 = vset.pattern.permute.xlu0 0
        %1532 = vperm.xlu0 %1531, %v1522
        %v1533 = vpop.permute.xlu0 %1532
        %v1535 = vadd.f32 %v1528, %v1533
        %v1536 = vadd.f32 %v1529, %v1533
        %v1537 = vmin.f32 %v1535, 20.0
        %v1538 = vmin.f32 %v1536, 20.0
        %v1539 = vmul.f32 %v1537, 1.442695
        %v1540 = vpow.pop %v1539
        %v1541 = vmul.f32 %v1538, 1.442695
        %v1542 = vpow.pop %v1541
        %v1543 = vadd.f32 %v1540, 2.0
        %v1544 = vadd.f32 %v1542, 2.0
        %v1545 = vmul.f32 %v1540, %v1543
        %v1546 = vmul.f32 %v1542, %v1544
        %v1547 = vadd.f32 %v1545, 2.0
        %v1548 = vadd.f32 %v1546, 2.0
        %v1549 = vrcp.pop %v1547
        %v1550 = vrcp.pop %v1548
        %v1551 = vmul.f32 %v1545, %v1549
        %v1552 = vmul.f32 %v1546, %v1550
        %v1553 = vmul.f32 %v1535, %v1551
        %v1554 = vmul.f32 %v1536, %v1552
        %v1555 = vadd.f32 %v1249, %v1553
        %v1556 = vadd.f32 %v1250, %v1554
        %v1557 = vld [vmem:[%s16] sm:$0x3]
        %v1558 = vpack.c.bf16 %v1555, %v1555
        %v1559 = vpack.c.bf16 %v1556, %v1556
        %v1561 = vsel %vm920, %v1557, 0
        %v1564 = vsel %vm667, %v1558, 0
        %v1567 = vsel %vm667, %v1559, 0
        %1569 = vmatprep.subr.bf16.mxu0 %v1567
        %1570 = vmatpush1.bf16.msra.mxu0 %v1564
        %1571 = vmatprep.subr.bf16.mxu0 0
        %1572 = vmatpush1.bf16.msra.mxu0 0
        %1573 = vmatprep.subr.bf16.mxu0 0
        %1574 = vmatpush1.bf16.msra.mxu0 0
        %1575 = vmatprep.subr.bf16.mxu0 0
        %1576 = vmatpush1.bf16.msra.mxu0 0
        %1577 = vmatprep.subr.bf16.mxu0 0
        %1578 = vmatpush1.bf16.msra.mxu0 0
        %1579 = vmatprep.subr.bf16.mxu0 0
        %1580 = vmatpush1.bf16.msra.mxu0 0
        %1581 = vmatprep.subr.bf16.mxu0 0
        %1582 = vmatpush1.bf16.msra.mxu0 0
        %1583 = vmatprep.subr.bf16.mxu0 0
        %1584 = vmatpush1.bf16.msra.mxu0 0
        %1585 = vmatprep.subr.bf16.mxu0 0
        %1586 = vmatpush1.bf16.msra.mxu0 0
        %1587 = vmatprep.subr.bf16.mxu0 0
        %1588 = vmatpush1.bf16.msra.mxu0 0
        %1589 = vmatprep.subr.bf16.mxu0 0
        %1590 = vmatpush1.bf16.msra.mxu0 0
        %1591 = vmatprep.subr.bf16.mxu0 0
        %1592 = vmatpush1.bf16.msra.mxu0 0
        %1593 = vmatprep.subr.bf16.mxu0 0
        %1594 = vmatpush1.bf16.msra.mxu0 0
        %1595 = vmatprep.subr.bf16.mxu0 0
        %1596 = vmatpush1.bf16.msra.mxu0 0
        %1597 = vmatprep.subr.bf16.mxu0 0
        %1598 = vmatpush1.bf16.msra.mxu0 0
        %1599 = vmatprep.subr.bf16.mxu0 0
        %1600 = vmatpush1.bf16.msra.mxu0 0
        %1601 = vmatprep.mubr.bf16.mxu0 0
        %1602 = vmatmul.mubr.bf16.gmra.mrb[0].mxu0 %v1561
        %v1603 = vpop.f32.mrb[0].mxu0
        %v1604 = vadd.f32 0.0, %v1603
        %v1605 = vpop.f32.mrb[0].mxu0
        %v1606 = vadd.f32 0.0, %v1605
        %v1607 = vpop.f32.mrb[0].mxu0
        %v1608 = vpop.f32.mrb[0].mxu0
        %1609 = vdwg.mxu0
        %v1610 = vld [vmem:[%s17] sm:$0xf]
        %v1611 = vld [vmem:[%s18] sm:$0xf]
        %1613 = vset.pattern.permute.xlu0 0
        %1614 = vperm.xlu0 %1613, %v1610
        %v1615 = vpop.permute.xlu0 %1614
        %v1617 = vmul.f32 %v1604, %v1615
        %v1618 = vmul.f32 %v1606, %v1615
        %1620 = vset.pattern.permute.xlu0 0
        %1621 = vperm.xlu0 %1620, %v1611
        %v1622 = vpop.permute.xlu0 %1621
        %v1624 = vadd.f32 %v1617, %v1622
        %v1625 = vadd.f32 %v1618, %v1622
        %v1626 = vmin.f32 %v1624, 20.0
        %v1627 = vmin.f32 %v1625, 20.0
        %v1628 = vmul.f32 %v1626, 1.442695
        %v1629 = vpow.pop %v1628
        %v1630 = vmul.f32 %v1627, 1.442695
        %v1631 = vpow.pop %v1630
        %v1632 = vadd.f32 %v1629, 2.0
        %v1633 = vadd.f32 %v1631, 2.0
        %v1634 = vmul.f32 %v1629, %v1632
        %v1635 = vmul.f32 %v1631, %v1633
        %v1636 = vadd.f32 %v1634, 2.0
        %v1637 = vadd.f32 %v1635, 2.0
        %v1638 = vrcp.pop %v1636
        %v1639 = vrcp.pop %v1637
        %v1640 = vmul.f32 %v1634, %v1638
        %v1641 = vmul.f32 %v1635, %v1639
        %v1642 = vmul.f32 %v1624, %v1640
        %v1643 = vmul.f32 %v1625, %v1641
        %v1646 = vrot.slane %v1642, 4
        %v1647 = vrot.slane %v1643, 4
        %v1650 = vsel %vm756, %v836, %v1646
        %v1651 = vsel %vm756, %v837, %v1647
        %1652 = vst [vmem:[%s622] sm:$0xff] %v1650
        %1653 = vst [vmem:[%s622 + $0x8] sm:$0xff] %v1651
        %s1654 = sand.u32 %s467, 1
        %s1655 = scalar_lea.sflag [#allocation3], %s1654
        %s1656 = sand.u32 %s467, 1
        %s1657 = smul.addr %s1656, 16
        %s1658 = scalar_lea.vmem [#allocation2], %s1657
        // Predicated region
        $region101: #{tpu_custom_call.1} parent=99 // pred_check
          %p1659 = pneg %p477
        $region102: #{tpu_custom_call.1} parent=99 // pred_check_branch
          %1661 = sbr.rel (%p1659) target = $region104
        $region103: #{tpu_custom_call.1} parent=99 // pred_region
          %s1663 = ssub.s32 256, 256
          %1664 = vsyncadd %s1655, %s1663
          %s1665 = smul.addr %s34, 2
          %s1666 = smul.addr %s1665, 128
          %s1667 = scalar_lea.hbm %s20, %s1666
          %s1669 = sshll.u32 %s1658, 4
          %s1670 = int_to_ptr.vmem [resolvable:$true] %s1669
          %1672 = dma.vmem_to_hbm [thread:$0]  %s1670, 256, %s1667, %s1655
        $region104: #{tpu_custom_call.1} parent=99 // pred_fallthru
          _
      $region100: #{tpu_custom_call.1} parent=5 // pred_fallthru
        _
      %p1673 = scmp.le.s32.totalorder 2, %s29
      // Predicated region
      $region105: #{tpu_custom_call.1} parent=5 // pred_check
        %p1674 = pneg %p1673
      $region106: #{tpu_custom_call.1} parent=5 // pred_check_branch
        %1676 = sbr.rel (%p1674) target = $region108
      $region107: #{tpu_custom_call.1} parent=5 // pred_region
        %s1677 = ssub.s32 %s29, 2
        // Predicated region
        $region109: #{tpu_custom_call.1} parent=107 // pred_check
          %p1678 = pneg %p483
        $region110: #{tpu_custom_call.1} parent=107 // pred_check_branch
          %1680 = sbr.rel (%p1678) target = $region112
        $region111: #{tpu_custom_call.1} parent=107 // pred_region
          %s1681 = sand.u32 %s468, 1
          %s1682 = scalar_lea.sflag [#allocation3], %s1681
          %s1683 = sand.u32 %s468, 1
          %s1684 = smul.addr %s1683, 16
          %s1685 = scalar_lea.vmem [#allocation2], %s1684
          %1686 = dma.done %s1682, 256
        $region112: #{tpu_custom_call.1} parent=107 // pred_fallthru
          _
      $region108: #{tpu_custom_call.1} parent=5 // pred_fallthru
        _
    $region6: #{tpu_custom_call.1} parent=1 // loop_footer
      %s33 = sadd.s32 1, %s29
    $region7: #{tpu_custom_call.1} parent=1 // loop_footer_branch
      %28 = sbr.rel target = $region3
    $region8: #{tpu_custom_call.1} parent=1 // loop_exit
      _
    %1687 = vsyncpa [#allocation3], 1
    %s1688 = scalar_lea.sflag [#allocation3], 1
    %1689 = vsyncpa %s1688, 1

</llo_original>
